<compile_context>
chip_gen: v5e
topology: v5e:2x2
jax: 0.10.0
libtpu: 0.0.40
codegen_flags: <defaults>
</compile_context>

<pallas_src>
import numpy as np
import jax
import jax.numpy as jnp
from jax.experimental import pallas as pl
from jax.experimental.pallas import tpu as pltpu


# ----------------------------------------------------------------------------------
# Pallas kernel: one full ASTGCN block forward for a single batch element.
# ----------------------------------------------------------------------------------
def _astgcn_block_kernel(
    xc_ref,                                   # (1, N, T*Fin)  cols ordered (t, f)
    u1_ref, u2_ref, u3bd_ref, be_ref, ve_ref,  # temporal attention
    selT_ref, selTt_ref, selF_ref,             # layout selection constants
    w1_ref, w2_ref, w3bd_ref, bs_ref, vs_ref,  # spatial attention
    eye_ref, lhat_ref,                         # eye(N), scaled Laplacian
    wcheb_ref, bcheb_ref,                      # fused Chebyshev weights / bias
    wtime_ref, bt_ref, wres_ref, br_ref,       # banded time conv / residual conv
    lng_ref, lngt_ref, gamma_ref, beta_ref,    # LayerNorm grouping + affine
    out_ref,                                   # (1, N, T*Ft)
):
    f32 = jnp.float32

    def dot(a, b):
        return jnp.dot(a, b, preferred_element_type=f32)

    Xc = xc_ref[0]                              # (N, T*Fin)
    TF = Xc.shape[1]
    K = wcheb_ref.shape[0] // TF

    # ---- temporal attention -> E (T, T), softmax over rows -----------------------
    a_row = dot(u1_ref[...], Xc)                                    # (1, T*Fin)
    A = dot(a_row * selT_ref[...], selF_ref[...])                   # (T, Fin)
    lhs_t = dot(A, u2_ref[...])                                     # (T, N)
    rhs_t = dot(Xc, u3bd_ref[...])                                  # (N, T)
    e = jax.nn.sigmoid(dot(lhs_t, rhs_t) + be_ref[...])             # (T, T)
    e = dot(ve_ref[...], e)
    e = e - jnp.max(e, axis=0, keepdims=True)
    e = jnp.exp(e)
    E = e / jnp.sum(e, axis=0, keepdims=True)                       # (T, T)

    # ---- spatial attention -> S (N, N)  (X_tilde = X x_t E folded in) ------------
    w1e = dot(selTt_ref[...], dot(E, w1_ref[...]))                  # (T*Fin, 1)
    b1 = dot(Xc, selF_ref[...] * w1e)                               # (N, Fin)
    lhs_s = dot(b1, w2_ref[...])                                    # (N, T)
    rhs_s = dot(dot(Xc, w3bd_ref[...]), E)                          # (N, T)
    s = jax.lax.dot_general(lhs_s, rhs_s, (((1,), (1,)), ((), ())),
                            preferred_element_type=f32)             # (N, N)
    s = jax.nn.sigmoid(s + bs_ref[...])
    s = dot(vs_ref[...], s)
    s = s - jnp.max(s, axis=0, keepdims=True)
    s = jnp.exp(s)
    S = s / jnp.sum(s, axis=0, keepdims=True)                       # (N, N)

    # ---- Chebyshev graph conv with attention, all T time steps batched -----------
    lhat = lhat_ref[...]
    diagS = jnp.sum(S * eye_ref[...], axis=1, keepdims=True)        # (N, 1)
    LS = lhat * S
    t_km2 = diagS * Xc                                              # T0  (N, T*Fin)
    terms = [t_km2]
    if K > 1:
        t_km1 = dot(LS, t_km2)                                      # T1
        terms.append(t_km1)
        for _ in range(2, K):
            t_k = 2.0 * dot(lhat, t_km1) - t_km2
            terms.append(t_k)
            t_km2, t_km1 = t_km1, t_k
    tcat = terms[0] if K == 1 else jnp.concatenate(terms, axis=1)   # (N, K*T*Fin)
    xhat = jnp.maximum(dot(tcat, wcheb_ref[...]) + bcheb_ref[...], 0.0)  # (N, T*Fc)

    # ---- 1x3 time conv (banded block matmul) + 1x1 residual + ReLU ---------------
    conv = dot(xhat, wtime_ref[...]) + bt_ref[...]                  # (N, T*Ft)
    res = dot(Xc, wres_ref[...]) + br_ref[...]                      # (N, T*Ft)
    z = jnp.maximum(res + conv, 0.0)

    # ---- LayerNorm over the Ft channels of each (n, t) group (grouping matmuls) --
    G = lng_ref[...]                                                # (T*Ft, T)
    Gt = lngt_ref[...]                                              # (T, T*Ft)
    inv_ft = 1.0 / (G.shape[0] // G.shape[1])
    mean = dot(z, G) * inv_ft                                       # (N, T)
    zc = z - dot(mean, Gt)                                          # (N, T*Ft)
    var = dot(zc * zc, G) * inv_ft                                  # (N, T)
    rstd = jax.lax.rsqrt(var + 1e-5)                                # (N, T)
    out_ref[0] = zc * dot(rstd, Gt) * gamma_ref[...] + beta_ref[...]


# ----------------------------------------------------------------------------------
# Host wrapper
# ----------------------------------------------------------------------------------
def astgcn_block(X, params, l_hat):
    B, N, Fin, T = X.shape
    K, _, Fc = params["wcheb"].shape
    Ft = params["wr"].shape[1]
    f32 = jnp.float32

    # single data layout: (B, N, T*Fin) with columns ordered (t, f)
    xc = jnp.transpose(X, (0, 1, 3, 2)).reshape(B, N, T * Fin)

    eyeT = jnp.eye(T, dtype=f32)
    eyeF = jnp.eye(Fin, dtype=f32)
    eyeN = jnp.eye(N, dtype=f32)

    # selection / replication constants for the interleaved (t, f) column layout
    selT = jnp.repeat(eyeT, Fin, axis=1)            # (T, T*Fin)   selT[t, t*Fin+f] = 1
    selTt = selT.T                                   # (T*Fin, T)
    selF = jnp.tile(eyeF, (T, 1))                    # (T*Fin, Fin) selF[t*Fin+f, f'] = (f==f')

    # structured parameter matrices (built once on the host)
    u3_bd = selTt * jnp.tile(params["u3"][:, 0], T)[:, None]        # (T*Fin, T)
    w3_bd = selTt * jnp.tile(params["w3"][:, 0], T)[:, None]        # (T*Fin, T)

    # fused K-order Chebyshev projection: (K*T*Fin, T*Fc) block-diagonal per time step
    wcheb_big = jnp.einsum("kfc,tu->ktfuc", params["wcheb"], eyeT
                           ).reshape(K * T * Fin, T * Fc)
    bcheb_big = jnp.tile(params["bcheb"], (1, T))                   # (1, T*Fc)

    # 1x3 temporal conv as a banded block matrix (T*Fc, T*Ft)
    wtime_band = jnp.zeros((T * Fc, T * Ft), f32)
    for kk in range(3):
        m = jnp.eye(T, T, k=1 - kk, dtype=f32)      # input time tc feeds output tc + 1 - kk
        wtime_band = wtime_band + jnp.einsum(
            "co,tu->tcuo", params["wt"][kk], m).reshape(T * Fc, T * Ft)
    bt_big = jnp.tile(params["bt"], (1, T))                         # (1, T*Ft)

    # 1x1 residual conv as a block-diagonal (T*Fin, T*Ft) matrix
    wres_bd = jnp.einsum("fo,tu->tfuo", params["wr"], eyeT).reshape(T * Fin, T * Ft)
    br_big = jnp.tile(params["br"], (1, T))                         # (1, T*Ft)

    # LayerNorm grouping matrices + tiled affine params
    lnG = jnp.repeat(eyeT, Ft, axis=0)              # (T*Ft, T)
    lnGt = lnG.T                                     # (T, T*Ft)
    gamma_big = jnp.tile(params["gamma"], (1, T))
    beta_big = jnp.tile(params["beta"], (1, T))

    param_arrays = [
        params["u1"], params["u2"], u3_bd, params["be"], params["ve"],
        selT, selTt, selF,
        params["w1"], params["w2"], w3_bd, params["bs"], params["vs"],
        eyeN, l_hat,
        wcheb_big, bcheb_big,
        wtime_band, bt_big, wres_bd, br_big,
        lnG, lnGt, gamma_big, beta_big,
    ]

    in_specs = [pl.BlockSpec((1, N, T * Fin), lambda b: (b, 0, 0))]
    for a in param_arrays:
        in_specs.append(pl.BlockSpec(a.shape, lambda b: (0, 0)))

    out = pl.pallas_call(
        _astgcn_block_kernel,
        out_shape=jax.ShapeDtypeStruct((B, N, T * Ft), f32),
        grid=(B,),
        in_specs=in_specs,
        out_specs=pl.BlockSpec((1, N, T * Ft), lambda b: (b, 0, 0)),
        compiler_params=pltpu.CompilerParams(dimension_semantics=("parallel",)),
    )(xc, *param_arrays)

    # (B, N, T*Ft) -> (B, N, Ft, T)  (PyTorch output convention)
    return jnp.transpose(out.reshape(B, N, T, Ft), (0, 1, 3, 2))


# ----------------------------------------------------------------------------------
# Pure-JAX reference (same dense math) for a correctness check
# ----------------------------------------------------------------------------------
def reference_forward(X, p, l_hat):
    B, N, Fin, T = X.shape
    K = p["wcheb"].shape[0]
    Ft = p["wr"].shape[1]
    # temporal attention
    lhs = jnp.einsum("bnft,n->btf", X, p["u1"][0]) @ p["u2"]              # (B,T,N)
    rhs = jnp.einsum("f,bnft->bnt", p["u3"][:, 0], X)                     # (B,N,T)
    e = jax.nn.sigmoid(jnp.einsum("btn,bnu->btu", lhs, rhs) + p["be"][None])
    E = jax.nn.softmax(jnp.einsum("ij,bjt->bit", p["ve"], e), axis=1)
    X_tilde = jnp.einsum("bnft,bts->bnfs", X, E)
    # spatial attention
    lhs_s = jnp.einsum("bnft,t->bnf", X_tilde, p["w1"][:, 0]) @ p["w2"]   # (B,N,T)
    rhs_s = jnp.einsum("f,bnft->btn", p["w3"][:, 0], X_tilde)             # (B,T,N)
    s = jax.nn.sigmoid(jnp.einsum("bnt,btm->bnm", lhs_s, rhs_s) + p["bs"][None])
    S = jax.nn.softmax(jnp.einsum("ij,bjk->bik", p["vs"], s), axis=1)
    # chebconv with attention
    diagS = jnp.diagonal(S, axis1=1, axis2=2)                             # (B,N)
    LS = l_hat[None] * S
    outs = []
    for t in range(T):
        x_t = X[:, :, :, t]
        T0 = diagS[..., None] * x_t
        o = T0 @ p["wcheb"][0]
        if K > 1:
            T1 = jnp.einsum("bij,bjf->bif", LS, T0)
            o = o + T1 @ p["wcheb"][1]
            tkm2, tkm1 = T0, T1
            for k in range(2, K):
                t2 = 2.0 * jnp.einsum("ij,bjf->bif", l_hat, tkm1) - tkm2
                o = o + t2 @ p["wcheb"][k]
                tkm2, tkm1 = tkm1, t2
        outs.append(o + p["bcheb"])
    X_hat = jax.nn.relu(jnp.stack(outs, axis=-1))                         # (B,N,Fc,T)
    # time conv (1x3, pad 1, stride 1) + residual (1x1)
    Xp = jnp.pad(X_hat, ((0, 0), (0, 0), (0, 0), (1, 1)))
    conv = jnp.zeros((B, N, Ft, T), jnp.float32)
    for kk in range(3):
        conv = conv + jnp.einsum("bnct,co->bnot", Xp[..., kk:kk + T], p["wt"][kk])
    conv = conv + p["bt"][0][None, None, :, None]
    res = jnp.einsum("bnft,fo->bnot", X, p["wr"]) + p["br"][0][None, None, :, None]
    Z = jax.nn.relu(res + conv)                                           # (B,N,Ft,T)
    Zp = jnp.transpose(Z, (0, 3, 1, 2))                                   # (B,T,N,Ft)
    mu = Zp.mean(-1, keepdims=True)
    var = ((Zp - mu) ** 2).mean(-1, keepdims=True)
    Y = (Zp - mu) / jnp.sqrt(var + 1e-5) * p["gamma"][0] + p["beta"][0]
    return jnp.transpose(Y, (0, 2, 3, 1))                                 # (B,N,Ft,T)


# ----------------------------------------------------------------------------------
# Deterministic parameter / graph construction
# ----------------------------------------------------------------------------------
def _xavier(key, shape, fan_in, fan_out):
    a = float(np.sqrt(6.0 / (fan_in + fan_out)))
    return jax.random.uniform(key, shape, jnp.float32, -a, a)


def make_params(key, N, Fin, T, K, Fc, Ft):
    ks = jax.random.split(key, 20)
    p = {}
    # temporal attention
    p["u1"] = jax.random.uniform(ks[0], (1, N), jnp.float32)
    p["u2"] = _xavier(ks[1], (Fin, N), Fin, N)
    p["u3"] = jax.random.uniform(ks[2], (Fin, 1), jnp.float32)
    p["be"] = _xavier(ks[3], (T, T), T, T)
    p["ve"] = _xavier(ks[4], (T, T), T, T)
    # spatial attention
    p["w1"] = jax.random.uniform(ks[5], (T, 1), jnp.float32)
    p["w2"] = _xavier(ks[6], (Fin, T), Fin, T)
    p["w3"] = jax.random.uniform(ks[7], (Fin, 1), jnp.float32)
    p["bs"] = _xavier(ks[8], (N, N), N, N)
    p["vs"] = _xavier(ks[9], (N, N), N, N)
    # chebconv
    p["wcheb"] = _xavier(ks[10], (K, Fin, Fc), Fin, Fc)
    p["bcheb"] = jax.random.uniform(ks[11], (1, Fc), jnp.float32)
    # time conv (1x3): stored pre-transposed as (3, Fc, Ft)
    p["wt"] = _xavier(ks[12], (3, Fc, Ft), 3 * Fc, Ft)
    p["bt"] = jax.random.uniform(ks[13], (1, Ft), jnp.float32)
    # residual conv (1x1): (Fin, Ft)
    p["wr"] = _xavier(ks[14], (Fin, Ft), Fin, Ft)
    p["br"] = jax.random.uniform(ks[15], (1, Ft), jnp.float32)
    # layer norm
    p["gamma"] = jax.random.uniform(ks[16], (1, Ft), jnp.float32)
    p["beta"] = jax.random.uniform(ks[17], (1, Ft), jnp.float32)
    return p


def make_scaled_laplacian(N):
    # Deterministic undirected graph: ring + a few chords.  sym normalization,
    # lambda_max = 2.0  =>  L_hat = 2L/lambda - I = -D^{-1/2} A D^{-1/2} (zero diagonal).
    A = np.zeros((N, N), np.float32)
    for i in range(N):
        A[i, (i + 1) % N] = 1.0
        A[(i + 1) % N, i] = 1.0
    for i in range(0, N, 4):
        j = (i + N // 2) % N
        A[i, j] = 1.0
        A[j, i] = 1.0
    deg = A.sum(1)
    dinv = 1.0 / np.sqrt(deg)
    l_hat = -(dinv[:, None] * A * dinv[None, :])
    return jnp.asarray(l_hat, jnp.float32)


# ----------------------------------------------------------------------------------
if __name__ == "__main__":
    B, N, Fin, T = 2, 16, 4, 8
    K, Fc, Ft = 3, 16, 16            # K, nb_chev_filter, nb_time_filter (time_strides=1)

    root = jax.random.PRNGKey(0)
    kx, kp = jax.random.split(root)
    X = jax.random.normal(kx, (B, N, Fin, T), jnp.float32)
    params = make_params(kp, N, Fin, T, K, Fc, Ft)
    l_hat = make_scaled_laplacian(N)

    out = astgcn_block(X, params, l_hat)
    out = jax.block_until_ready(out)
    assert out.shape == (B, N, Ft, T), out.shape

    ref = reference_forward(X, params, l_hat)
    # Tolerance accounts for default-precision (bf16-pass) MXU matmuls in both paths.
    np.testing.assert_allclose(np.asarray(out), np.asarray(ref), rtol=5e-2, atol=5e-2)

    print("KERNEL_OK")
</pallas_src>

<mosaic_0001>
module attributes {stable_mosaic.version = 11 : i64} {
  func.func @_astgcn_block_kernel(%arg0: i32, %arg1: memref<1x16x32xf32, #tpu.memory_space<vmem>>, %arg2: memref<1x16xf32, #tpu.memory_space<vmem>>, %arg3: memref<4x16xf32, #tpu.memory_space<vmem>>, %arg4: memref<32x8xf32, #tpu.memory_space<vmem>>, %arg5: memref<8x8xf32, #tpu.memory_space<vmem>>, %arg6: memref<8x8xf32, #tpu.memory_space<vmem>>, %arg7: memref<8x32xf32, #tpu.memory_space<vmem>>, %arg8: memref<32x8xf32, #tpu.memory_space<vmem>>, %arg9: memref<32x4xf32, #tpu.memory_space<vmem>>, %arg10: memref<8x1xf32, #tpu.memory_space<vmem>>, %arg11: memref<4x8xf32, #tpu.memory_space<vmem>>, %arg12: memref<32x8xf32, #tpu.memory_space<vmem>>, %arg13: memref<16x16xf32, #tpu.memory_space<vmem>>, %arg14: memref<16x16xf32, #tpu.memory_space<vmem>>, %arg15: memref<16x16xf32, #tpu.memory_space<vmem>>, %arg16: memref<16x16xf32, #tpu.memory_space<vmem>>, %arg17: memref<96x128xf32, #tpu.memory_space<vmem>>, %arg18: memref<1x128xf32, #tpu.memory_space<vmem>>, %arg19: memref<128x128xf32, #tpu.memory_space<vmem>>, %arg20: memref<1x128xf32, #tpu.memory_space<vmem>>, %arg21: memref<32x128xf32, #tpu.memory_space<vmem>>, %arg22: memref<1x128xf32, #tpu.memory_space<vmem>>, %arg23: memref<128x8xf32, #tpu.memory_space<vmem>>, %arg24: memref<8x128xf32, #tpu.memory_space<vmem>>, %arg25: memref<1x128xf32, #tpu.memory_space<vmem>>, %arg26: memref<1x128xf32, #tpu.memory_space<vmem>>, %arg27: memref<1x16x128xf32, #tpu.memory_space<vmem>>) attributes {dimension_semantics = [#tpu.dimension_semantics<parallel>], iteration_bounds = array<i64: 2>, scalar_prefetch = 0 : i64, scratch_operands = 0 : i64, tpu.core_type = #tpu.core_type<tc>, window_params = [{transform_indices = @transform_0, window_bounds = array<i64: 1, 16, 32>}, {pipeline_mode = #tpu.pipeline_mode<synchronous>, transform_indices = @transform_1, window_bounds = array<i64: 1, 16>}, {pipeline_mode = #tpu.pipeline_mode<synchronous>, transform_indices = @transform_2, window_bounds = array<i64: 4, 16>}, {pipeline_mode = #tpu.pipeline_mode<synchronous>, transform_indices = @transform_3, window_bounds = array<i64: 32, 8>}, {pipeline_mode = #tpu.pipeline_mode<synchronous>, transform_indices = @transform_4, window_bounds = array<i64: 8, 8>}, {pipeline_mode = #tpu.pipeline_mode<synchronous>, transform_indices = @transform_5, window_bounds = array<i64: 8, 8>}, {pipeline_mode = #tpu.pipeline_mode<synchronous>, transform_indices = @transform_6, window_bounds = array<i64: 8, 32>}, {pipeline_mode = #tpu.pipeline_mode<synchronous>, transform_indices = @transform_7, window_bounds = array<i64: 32, 8>}, {pipeline_mode = #tpu.pipeline_mode<synchronous>, transform_indices = @transform_8, window_bounds = array<i64: 32, 4>}, {pipeline_mode = #tpu.pipeline_mode<synchronous>, transform_indices = @transform_9, window_bounds = array<i64: 8, 1>}, {pipeline_mode = #tpu.pipeline_mode<synchronous>, transform_indices = @transform_10, window_bounds = array<i64: 4, 8>}, {pipeline_mode = #tpu.pipeline_mode<synchronous>, transform_indices = @transform_11, window_bounds = array<i64: 32, 8>}, {pipeline_mode = #tpu.pipeline_mode<synchronous>, transform_indices = @transform_12, window_bounds = array<i64: 16, 16>}, {pipeline_mode = #tpu.pipeline_mode<synchronous>, transform_indices = @transform_13, window_bounds = array<i64: 16, 16>}, {pipeline_mode = #tpu.pipeline_mode<synchronous>, transform_indices = @transform_14, window_bounds = array<i64: 16, 16>}, {pipeline_mode = #tpu.pipeline_mode<synchronous>, transform_indices = @transform_15, window_bounds = array<i64: 16, 16>}, {pipeline_mode = #tpu.pipeline_mode<synchronous>, transform_indices = @transform_16, window_bounds = array<i64: 96, 128>}, {pipeline_mode = #tpu.pipeline_mode<synchronous>, transform_indices = @transform_17, window_bounds = array<i64: 1, 128>}, {pipeline_mode = #tpu.pipeline_mode<synchronous>, transform_indices = @transform_18, window_bounds = array<i64: 128, 128>}, {pipeline_mode = #tpu.pipeline_mode<synchronous>, transform_indices = @transform_19, window_bounds = array<i64: 1, 128>}, {pipeline_mode = #tpu.pipeline_mode<synchronous>, transform_indices = @transform_20, window_bounds = array<i64: 32, 128>}, {pipeline_mode = #tpu.pipeline_mode<synchronous>, transform_indices = @transform_21, window_bounds = array<i64: 1, 128>}, {pipeline_mode = #tpu.pipeline_mode<synchronous>, transform_indices = @transform_22, window_bounds = array<i64: 128, 8>}, {pipeline_mode = #tpu.pipeline_mode<synchronous>, transform_indices = @transform_23, window_bounds = array<i64: 8, 128>}, {pipeline_mode = #tpu.pipeline_mode<synchronous>, transform_indices = @transform_24, window_bounds = array<i64: 1, 128>}, {pipeline_mode = #tpu.pipeline_mode<synchronous>, transform_indices = @transform_25, window_bounds = array<i64: 1, 128>}, {transform_indices = @transform_26, window_bounds = array<i64: 1, 16, 128>}]} {
    %c0 = arith.constant 0 : index
    %c0_0 = arith.constant 0 : index
    %c0_1 = arith.constant 0 : index
    %0 = vector.load %arg1[%c0, %c0_0, %c0_1] : memref<1x16x32xf32, #tpu.memory_space<vmem>>, vector<1x16x32xf32>
    %1 = vector.shape_cast %0 : vector<1x16x32xf32> to vector<16x32xf32>
    %c0_2 = arith.constant 0 : index
    %c0_3 = arith.constant 0 : index
    %2 = vector.load %arg2[%c0_2, %c0_3] : memref<1x16xf32, #tpu.memory_space<vmem>>, vector<1x16xf32>
    %cst = arith.constant dense<0.000000e+00> : vector<1x32xf32>
    %3 = tpu.matmul %2, %1, %cst {dimension_numbers = #tpu.dot_dimension_numbers<[1], [0], [0], [1], [0, 0, 1, 1], [], []>} : vector<1x16xf32>, vector<16x32xf32>, vector<1x32xf32> -> vector<1x32xf32>
    %c0_4 = arith.constant 0 : index
    %c0_5 = arith.constant 0 : index
    %4 = vector.load %arg7[%c0_4, %c0_5] : memref<8x32xf32, #tpu.memory_space<vmem>>, vector<8x32xf32>
    %5 = vector.broadcast %3 : vector<1x32xf32> to vector<8x32xf32>
    %6 = arith.mulf %5, %4 : vector<8x32xf32>
    %c0_6 = arith.constant 0 : index
    %c0_7 = arith.constant 0 : index
    %7 = vector.load %arg9[%c0_6, %c0_7] : memref<32x4xf32, #tpu.memory_space<vmem>>, vector<32x4xf32>
    %cst_8 = arith.constant dense<0.000000e+00> : vector<8x4xf32>
    %8 = tpu.matmul %6, %7, %cst_8 {dimension_numbers = #tpu.dot_dimension_numbers<[1], [0], [0], [1], [0, 0, 1, 1], [], []>} : vector<8x32xf32>, vector<32x4xf32>, vector<8x4xf32> -> vector<8x4xf32>
    %c0_9 = arith.constant 0 : index
    %c0_10 = arith.constant 0 : index
    %9 = vector.load %arg3[%c0_9, %c0_10] : memref<4x16xf32, #tpu.memory_space<vmem>>, vector<4x16xf32>
    %cst_11 = arith.constant dense<0.000000e+00> : vector<8x16xf32>
    %10 = tpu.matmul %8, %9, %cst_11 {dimension_numbers = #tpu.dot_dimension_numbers<[1], [0], [0], [1], [0, 0, 1, 1], [], []>} : vector<8x4xf32>, vector<4x16xf32>, vector<8x16xf32> -> vector<8x16xf32>
    %c0_12 = arith.constant 0 : index
    %c0_13 = arith.constant 0 : index
    %11 = vector.load %arg4[%c0_12, %c0_13] : memref<32x8xf32, #tpu.memory_space<vmem>>, vector<32x8xf32>
    %cst_14 = arith.constant dense<0.000000e+00> : vector<16x8xf32>
    %12 = tpu.matmul %1, %11, %cst_14 {dimension_numbers = #tpu.dot_dimension_numbers<[1], [0], [0], [1], [0, 0, 1, 1], [], []>} : vector<16x32xf32>, vector<32x8xf32>, vector<16x8xf32> -> vector<16x8xf32>
    %cst_15 = arith.constant dense<0.000000e+00> : vector<8x8xf32>
    %13 = tpu.matmul %10, %12, %cst_15 {dimension_numbers = #tpu.dot_dimension_numbers<[1], [0], [0], [1], [0, 0, 1, 1], [], []>} : vector<8x16xf32>, vector<16x8xf32>, vector<8x8xf32> -> vector<8x8xf32>
    %c0_16 = arith.constant 0 : index
    %c0_17 = arith.constant 0 : index
    %14 = vector.load %arg5[%c0_16, %c0_17] : memref<8x8xf32, #tpu.memory_space<vmem>>, vector<8x8xf32>
    %15 = arith.addf %13, %14 : vector<8x8xf32>
    %16 = arith.negf %15 : vector<8x8xf32>
    %17 = math.exp %16 : vector<8x8xf32>
    %cst_18 = arith.constant 1.000000e+00 : f32
    %18 = vector.broadcast %cst_18 : f32 to vector<8x8xf32>
    %19 = arith.addf %18, %17 : vector<8x8xf32>
    %20 = arith.divf %18, %19 : vector<8x8xf32>
    %c0_19 = arith.constant 0 : index
    %c0_20 = arith.constant 0 : index
    %21 = vector.load %arg6[%c0_19, %c0_20] : memref<8x8xf32, #tpu.memory_space<vmem>>, vector<8x8xf32>
    %cst_21 = arith.constant dense<0.000000e+00> : vector<8x8xf32>
    %22 = tpu.matmul %21, %20, %cst_21 {dimension_numbers = #tpu.dot_dimension_numbers<[1], [0], [0], [1], [0, 0, 1, 1], [], []>} : vector<8x8xf32>, vector<8x8xf32>, vector<8x8xf32> -> vector<8x8xf32>
    %cst_22 = arith.constant dense<0xFF800000> : vector<8xf32>
    %23 = vector.multi_reduction <maximumf>, %22, %cst_22 [0] : vector<8x8xf32> to vector<8xf32>
    %24 = vector.shape_cast %23 : vector<8xf32> to vector<1x8xf32>
    %25 = vector.broadcast %24 : vector<1x8xf32> to vector<8x8xf32>
    %26 = arith.subf %22, %25 : vector<8x8xf32>
    %27 = math.exp %26 : vector<8x8xf32>
    %cst_23 = arith.constant dense<0.000000e+00> : vector<8xf32>
    %28 = vector.multi_reduction <add>, %27, %cst_23 [0] : vector<8x8xf32> to vector<8xf32>
    %29 = vector.shape_cast %28 : vector<8xf32> to vector<1x8xf32>
    %30 = vector.broadcast %29 : vector<1x8xf32> to vector<8x8xf32>
    %31 = arith.divf %27, %30 : vector<8x8xf32>
    %c0_24 = arith.constant 0 : index
    %c0_25 = arith.constant 0 : index
    %32 = vector.load %arg8[%c0_24, %c0_25] : memref<32x8xf32, #tpu.memory_space<vmem>>, vector<32x8xf32>
    %c0_26 = arith.constant 0 : index
    %c0_27 = arith.constant 0 : index
    %33 = vector.load %arg10[%c0_26, %c0_27] : memref<8x1xf32, #tpu.memory_space<vmem>>, vector<8x1xf32>
    %cst_28 = arith.constant dense<0.000000e+00> : vector<8x1xf32>
    %34 = tpu.matmul %31, %33, %cst_28 {dimension_numbers = #tpu.dot_dimension_numbers<[1], [0], [0], [1], [0, 0, 1, 1], [], []>} : vector<8x8xf32>, vector<8x1xf32>, vector<8x1xf32> -> vector<8x1xf32>
    %cst_29 = arith.constant dense<0.000000e+00> : vector<32x1xf32>
    %35 = tpu.matmul %32, %34, %cst_29 {dimension_numbers = #tpu.dot_dimension_numbers<[1], [0], [0], [1], [0, 0, 1, 1], [], []>} : vector<32x8xf32>, vector<8x1xf32>, vector<32x1xf32> -> vector<32x1xf32>
    %c0_30 = arith.constant 0 : index
    %c0_31 = arith.constant 0 : index
    %36 = vector.load %arg9[%c0_30, %c0_31] : memref<32x4xf32, #tpu.memory_space<vmem>>, vector<32x4xf32>
    %37 = vector.broadcast %35 : vector<32x1xf32> to vector<32x4xf32>
    %38 = arith.mulf %36, %37 : vector<32x4xf32>
    %cst_32 = arith.constant dense<0.000000e+00> : vector<16x4xf32>
    %39 = tpu.matmul %1, %38, %cst_32 {dimension_numbers = #tpu.dot_dimension_numbers<[1], [0], [0], [1], [0, 0, 1, 1], [], []>} : vector<16x32xf32>, vector<32x4xf32>, vector<16x4xf32> -> vector<16x4xf32>
    %c0_33 = arith.constant 0 : index
    %c0_34 = arith.constant 0 : index
    %40 = vector.load %arg11[%c0_33, %c0_34] : memref<4x8xf32, #tpu.memory_space<vmem>>, vector<4x8xf32>
    %cst_35 = arith.constant dense<0.000000e+00> : vector<16x8xf32>
    %41 = tpu.matmul %39, %40, %cst_35 {dimension_numbers = #tpu.dot_dimension_numbers<[1], [0], [0], [1], [0, 0, 1, 1], [], []>} : vector<16x4xf32>, vector<4x8xf32>, vector<16x8xf32> -> vector<16x8xf32>
    %c0_36 = arith.constant 0 : index
    %c0_37 = arith.constant 0 : index
    %42 = vector.load %arg12[%c0_36, %c0_37] : memref<32x8xf32, #tpu.memory_space<vmem>>, vector<32x8xf32>
    %cst_38 = arith.constant dense<0.000000e+00> : vector<16x8xf32>
    %43 = tpu.matmul %1, %42, %cst_38 {dimension_numbers = #tpu.dot_dimension_numbers<[1], [0], [0], [1], [0, 0, 1, 1], [], []>} : vector<16x32xf32>, vector<32x8xf32>, vector<16x8xf32> -> vector<16x8xf32>
    %cst_39 = arith.constant dense<0.000000e+00> : vector<16x8xf32>
    %44 = tpu.matmul %43, %31, %cst_39 {dimension_numbers = #tpu.dot_dimension_numbers<[1], [0], [0], [1], [0, 0, 1, 1], [], []>} : vector<16x8xf32>, vector<8x8xf32>, vector<16x8xf32> -> vector<16x8xf32>
    %cst_40 = arith.constant dense<0.000000e+00> : vector<16x16xf32>
    %45 = tpu.matmul %41, %44, %cst_40 {dimension_numbers = #tpu.dot_dimension_numbers<[1], [1], [0], [0], [0, 0, 1, 0], [], []>} : vector<16x8xf32>, vector<16x8xf32>, vector<16x16xf32> -> vector<16x16xf32>
    %c0_41 = arith.constant 0 : index
    %c0_42 = arith.constant 0 : index
    %46 = vector.load %arg13[%c0_41, %c0_42] : memref<16x16xf32, #tpu.memory_space<vmem>>, vector<16x16xf32>
    %47 = arith.addf %45, %46 : vector<16x16xf32>
    %48 = arith.negf %47 : vector<16x16xf32>
    %49 = math.exp %48 : vector<16x16xf32>
    %cst_43 = arith.constant 1.000000e+00 : f32
    %50 = vector.broadcast %cst_43 : f32 to vector<16x16xf32>
    %51 = arith.addf %50, %49 : vector<16x16xf32>
    %52 = arith.divf %50, %51 : vector<16x16xf32>
    %c0_44 = arith.constant 0 : index
    %c0_45 = arith.constant 0 : index
    %53 = vector.load %arg14[%c0_44, %c0_45] : memref<16x16xf32, #tpu.memory_space<vmem>>, vector<16x16xf32>
    %cst_46 = arith.constant dense<0.000000e+00> : vector<16x16xf32>
    %54 = tpu.matmul %53, %52, %cst_46 {dimension_numbers = #tpu.dot_dimension_numbers<[1], [0], [0], [1], [0, 0, 1, 1], [], []>} : vector<16x16xf32>, vector<16x16xf32>, vector<16x16xf32> -> vector<16x16xf32>
    %cst_47 = arith.constant dense<0xFF800000> : vector<16xf32>
    %55 = vector.multi_reduction <maximumf>, %54, %cst_47 [0] : vector<16x16xf32> to vector<16xf32>
    %56 = vector.shape_cast %55 : vector<16xf32> to vector<1x16xf32>
    %57 = vector.broadcast %56 : vector<1x16xf32> to vector<16x16xf32>
    %58 = arith.subf %54, %57 : vector<16x16xf32>
    %59 = math.exp %58 : vector<16x16xf32>
    %cst_48 = arith.constant dense<0.000000e+00> : vector<16xf32>
    %60 = vector.multi_reduction <add>, %59, %cst_48 [0] : vector<16x16xf32> to vector<16xf32>
    %61 = vector.shape_cast %60 : vector<16xf32> to vector<1x16xf32>
    %62 = vector.broadcast %61 : vector<1x16xf32> to vector<16x16xf32>
    %63 = arith.divf %59, %62 : vector<16x16xf32>
    %c0_49 = arith.constant 0 : index
    %c0_50 = arith.constant 0 : index
    %64 = vector.load %arg16[%c0_49, %c0_50] : memref<16x16xf32, #tpu.memory_space<vmem>>, vector<16x16xf32>
    %c0_51 = arith.constant 0 : index
    %c0_52 = arith.constant 0 : index
    %65 = vector.load %arg15[%c0_51, %c0_52] : memref<16x16xf32, #tpu.memory_space<vmem>>, vector<16x16xf32>
    %66 = arith.mulf %63, %65 : vector<16x16xf32>
    %cst_53 = arith.constant dense<0.000000e+00> : vector<16xf32>
    %67 = vector.multi_reduction <add>, %66, %cst_53 [1] : vector<16x16xf32> to vector<16xf32>
    %68 = vector.shape_cast %67 : vector<16xf32> to vector<16x1xf32>
    %69 = arith.mulf %64, %63 : vector<16x16xf32>
    %70 = vector.broadcast %68 : vector<16x1xf32> to vector<16x32xf32>
    %71 = arith.mulf %70, %1 : vector<16x32xf32>
    %cst_54 = arith.constant dense<0.000000e+00> : vector<16x32xf32>
    %72 = tpu.matmul %69, %71, %cst_54 {dimension_numbers = #tpu.dot_dimension_numbers<[1], [0], [0], [1], [0, 0, 1, 1], [], []>} : vector<16x16xf32>, vector<16x32xf32>, vector<16x32xf32> -> vector<16x32xf32>
    %cst_55 = arith.constant dense<0.000000e+00> : vector<16x32xf32>
    %73 = tpu.matmul %64, %72, %cst_55 {dimension_numbers = #tpu.dot_dimension_numbers<[1], [0], [0], [1], [0, 0, 1, 1], [], []>} : vector<16x16xf32>, vector<16x32xf32>, vector<16x32xf32> -> vector<16x32xf32>
    %cst_56 = arith.constant 2.000000e+00 : f32
    %74 = vector.broadcast %cst_56 : f32 to vector<16x32xf32>
    %75 = arith.mulf %74, %73 : vector<16x32xf32>
    %76 = arith.subf %75, %71 : vector<16x32xf32>
    %77 = tpu.concatenate %71, %72, %76 in 1 : vector<16x32xf32>, vector<16x32xf32>, vector<16x32xf32> -> vector<16x96xf32>
    %c0_57 = arith.constant 0 : index
    %c0_58 = arith.constant 0 : index
    %78 = vector.load %arg17[%c0_57, %c0_58] : memref<96x128xf32, #tpu.memory_space<vmem>>, vector<96x128xf32>
    %cst_59 = arith.constant dense<0.000000e+00> : vector<16x128xf32>
    %79 = tpu.matmul %77, %78, %cst_59 {dimension_numbers = #tpu.dot_dimension_numbers<[1], [0], [0], [1], [0, 0, 1, 1], [], []>} : vector<16x96xf32>, vector<96x128xf32>, vector<16x128xf32> -> vector<16x128xf32>
    %c0_60 = arith.constant 0 : index
    %c0_61 = arith.constant 0 : index
    %80 = vector.load %arg18[%c0_60, %c0_61] : memref<1x128xf32, #tpu.memory_space<vmem>>, vector<1x128xf32>
    %81 = vector.broadcast %80 : vector<1x128xf32> to vector<16x128xf32>
    %82 = arith.addf %79, %81 : vector<16x128xf32>
    %cst_62 = arith.constant 0.000000e+00 : f32
    %83 = vector.broadcast %cst_62 : f32 to vector<16x128xf32>
    %84 = arith.maximumf %82, %83 : vector<16x128xf32>
    %c0_63 = arith.constant 0 : index
    %c0_64 = arith.constant 0 : index
    %85 = vector.load %arg19[%c0_63, %c0_64] : memref<128x128xf32, #tpu.memory_space<vmem>>, vector<128x128xf32>
    %cst_65 = arith.constant dense<0.000000e+00> : vector<16x128xf32>
    %86 = tpu.matmul %84, %85, %cst_65 {dimension_numbers = #tpu.dot_dimension_numbers<[1], [0], [0], [1], [0, 0, 1, 1], [], []>} : vector<16x128xf32>, vector<128x128xf32>, vector<16x128xf32> -> vector<16x128xf32>
    %c0_66 = arith.constant 0 : index
    %c0_67 = arith.constant 0 : index
    %87 = vector.load %arg20[%c0_66, %c0_67] : memref<1x128xf32, #tpu.memory_space<vmem>>, vector<1x128xf32>
    %88 = vector.broadcast %87 : vector<1x128xf32> to vector<16x128xf32>
    %89 = arith.addf %86, %88 : vector<16x128xf32>
    %c0_68 = arith.constant 0 : index
    %c0_69 = arith.constant 0 : index
    %90 = vector.load %arg21[%c0_68, %c0_69] : memref<32x128xf32, #tpu.memory_space<vmem>>, vector<32x128xf32>
    %cst_70 = arith.constant dense<0.000000e+00> : vector<16x128xf32>
    %91 = tpu.matmul %1, %90, %cst_70 {dimension_numbers = #tpu.dot_dimension_numbers<[1], [0], [0], [1], [0, 0, 1, 1], [], []>} : vector<16x32xf32>, vector<32x128xf32>, vector<16x128xf32> -> vector<16x128xf32>
    %c0_71 = arith.constant 0 : index
    %c0_72 = arith.constant 0 : index
    %92 = vector.load %arg22[%c0_71, %c0_72] : memref<1x128xf32, #tpu.memory_space<vmem>>, vector<1x128xf32>
    %93 = vector.broadcast %92 : vector<1x128xf32> to vector<16x128xf32>
    %94 = arith.addf %91, %93 : vector<16x128xf32>
    %95 = arith.addf %94, %89 : vector<16x128xf32>
    %cst_73 = arith.constant 0.000000e+00 : f32
    %96 = vector.broadcast %cst_73 : f32 to vector<16x128xf32>
    %97 = arith.maximumf %95, %96 : vector<16x128xf32>
    %c0_74 = arith.constant 0 : index
    %c0_75 = arith.constant 0 : index
    %98 = vector.load %arg23[%c0_74, %c0_75] : memref<128x8xf32, #tpu.memory_space<vmem>>, vector<128x8xf32>
    %c0_76 = arith.constant 0 : index
    %c0_77 = arith.constant 0 : index
    %99 = vector.load %arg24[%c0_76, %c0_77] : memref<8x128xf32, #tpu.memory_space<vmem>>, vector<8x128xf32>
    %cst_78 = arith.constant dense<0.000000e+00> : vector<16x8xf32>
    %100 = tpu.matmul %97, %98, %cst_78 {dimension_numbers = #tpu.dot_dimension_numbers<[1], [0], [0], [1], [0, 0, 1, 1], [], []>} : vector<16x128xf32>, vector<128x8xf32>, vector<16x8xf32> -> vector<16x8xf32>
    %cst_79 = arith.constant 6.250000e-02 : f32
    %101 = vector.broadcast %cst_79 : f32 to vector<16x8xf32>
    %102 = arith.mulf %100, %101 : vector<16x8xf32>
    %cst_80 = arith.constant dense<0.000000e+00> : vector<16x128xf32>
    %103 = tpu.matmul %102, %99, %cst_80 {dimension_numbers = #tpu.dot_dimension_numbers<[1], [0], [0], [1], [0, 0, 1, 1], [], []>} : vector<16x8xf32>, vector<8x128xf32>, vector<16x128xf32> -> vector<16x128xf32>
    %104 = arith.subf %97, %103 : vector<16x128xf32>
    %105 = arith.mulf %104, %104 : vector<16x128xf32>
    %cst_81 = arith.constant dense<0.000000e+00> : vector<16x8xf32>
    %106 = tpu.matmul %105, %98, %cst_81 {dimension_numbers = #tpu.dot_dimension_numbers<[1], [0], [0], [1], [0, 0, 1, 1], [], []>} : vector<16x128xf32>, vector<128x8xf32>, vector<16x8xf32> -> vector<16x8xf32>
    %cst_82 = arith.constant 6.250000e-02 : f32
    %107 = vector.broadcast %cst_82 : f32 to vector<16x8xf32>
    %108 = arith.mulf %106, %107 : vector<16x8xf32>
    %cst_83 = arith.constant 9.99999974E-6 : f32
    %109 = vector.broadcast %cst_83 : f32 to vector<16x8xf32>
    %110 = arith.addf %108, %109 : vector<16x8xf32>
    %111 = math.rsqrt %110 : vector<16x8xf32>
    %cst_84 = arith.constant dense<0.000000e+00> : vector<16x128xf32>
    %112 = tpu.matmul %111, %99, %cst_84 {dimension_numbers = #tpu.dot_dimension_numbers<[1], [0], [0], [1], [0, 0, 1, 1], [], []>} : vector<16x8xf32>, vector<8x128xf32>, vector<16x128xf32> -> vector<16x128xf32>
    %113 = arith.mulf %104, %112 : vector<16x128xf32>
    %c0_85 = arith.constant 0 : index
    %c0_86 = arith.constant 0 : index
    %114 = vector.load %arg25[%c0_85, %c0_86] : memref<1x128xf32, #tpu.memory_space<vmem>>, vector<1x128xf32>
    %115 = vector.broadcast %114 : vector<1x128xf32> to vector<16x128xf32>
    %116 = arith.mulf %113, %115 : vector<16x128xf32>
    %c0_87 = arith.constant 0 : index
    %c0_88 = arith.constant 0 : index
    %117 = vector.load %arg26[%c0_87, %c0_88] : memref<1x128xf32, #tpu.memory_space<vmem>>, vector<1x128xf32>
    %118 = vector.broadcast %117 : vector<1x128xf32> to vector<16x128xf32>
    %119 = arith.addf %116, %118 : vector<16x128xf32>
    %c0_89 = arith.constant 0 : index
    %c0_90 = arith.constant 0 : index
    %c0_91 = arith.constant 0 : index
    %120 = vector.load %arg27[%c0_89, %c0_90, %c0_91] : memref<1x16x128xf32, #tpu.memory_space<vmem>>, vector<1x16x128xf32>
    %121 = vector.shape_cast %120 : vector<1x16x128xf32> to vector<16x128xf32>
    %122 = vector.shape_cast %119 : vector<16x128xf32> to vector<1x16x128xf32>
    tpu.vector_store %arg27[%c0_89, %c0_90, %c0_91], %122 {strides = array<i32>} : memref<1x16x128xf32, #tpu.memory_space<vmem>>, vector<1x16x128xf32>,
    return
  }
  func.func @transform_0(%arg0: i32) -> (i32, i32, i32) {
    %c0_i32 = arith.constant 0 : i32
    %c0_i32_0 = arith.constant 0 : i32
    %c0_i32_1 = arith.constant 0 : i32
    return %arg0, %c0_i32, %c0_i32_0 : i32, i32, i32
  }
  func.func @transform_1(%arg0: i32) -> (i32, i32) {
    %c0_i32 = arith.constant 0 : i32
    %c0_i32_0 = arith.constant 0 : i32
    %c0_i32_1 = arith.constant 0 : i32
    return %c0_i32, %c0_i32_0 : i32, i32
  }
  func.func @transform_2(%arg0: i32) -> (i32, i32) {
    %c0_i32 = arith.constant 0 : i32
    %c0_i32_0 = arith.constant 0 : i32
    %c0_i32_1 = arith.constant 0 : i32
    return %c0_i32, %c0_i32_0 : i32, i32
  }
  func.func @transform_3(%arg0: i32) -> (i32, i32) {
    %c0_i32 = arith.constant 0 : i32
    %c0_i32_0 = arith.constant 0 : i32
    %c0_i32_1 = arith.constant 0 : i32
    return %c0_i32, %c0_i32_0 : i32, i32
  }
  func.func @transform_4(%arg0: i32) -> (i32, i32) {
    %c0_i32 = arith.constant 0 : i32
    %c0_i32_0 = arith.constant 0 : i32
    %c0_i32_1 = arith.constant 0 : i32
    return %c0_i32, %c0_i32_0 : i32, i32
  }
  func.func @transform_5(%arg0: i32) -> (i32, i32) {
    %c0_i32 = arith.constant 0 : i32
    %c0_i32_0 = arith.constant 0 : i32
    %c0_i32_1 = arith.constant 0 : i32
    return %c0_i32, %c0_i32_0 : i32, i32
  }
  func.func @transform_6(%arg0: i32) -> (i32, i32) {
    %c0_i32 = arith.constant 0 : i32
    %c0_i32_0 = arith.constant 0 : i32
    %c0_i32_1 = arith.constant 0 : i32
    return %c0_i32, %c0_i32_0 : i32, i32
  }
  func.func @transform_7(%arg0: i32) -> (i32, i32) {
    %c0_i32 = arith.constant 0 : i32
    %c0_i32_0 = arith.constant 0 : i32
    %c0_i32_1 = arith.constant 0 : i32
    return %c0_i32, %c0_i32_0 : i32, i32
  }
  func.func @transform_8(%arg0: i32) -> (i32, i32) {
    %c0_i32 = arith.constant 0 : i32
    %c0_i32_0 = arith.constant 0 : i32
    %c0_i32_1 = arith.constant 0 : i32
    return %c0_i32, %c0_i32_0 : i32, i32
  }
  func.func @transform_9(%arg0: i32) -> (i32, i32) {
    %c0_i32 = arith.constant 0 : i32
    %c0_i32_0 = arith.constant 0 : i32
    %c0_i32_1 = arith.constant 0 : i32
    return %c0_i32, %c0_i32_0 : i32, i32
  }
  func.func @transform_10(%arg0: i32) -> (i32, i32) {
    %c0_i32 = arith.constant 0 : i32
    %c0_i32_0 = arith.constant 0 : i32
    %c0_i32_1 = arith.constant 0 : i32
    return %c0_i32, %c0_i32_0 : i32, i32
  }
  func.func @transform_11(%arg0: i32) -> (i32, i32) {
    %c0_i32 = arith.constant 0 : i32
    %c0_i32_0 = arith.constant 0 : i32
    %c0_i32_1 = arith.constant 0 : i32
    return %c0_i32, %c0_i32_0 : i32, i32
  }
  func.func @transform_12(%arg0: i32) -> (i32, i32) {
    %c0_i32 = arith.constant 0 : i32
    %c0_i32_0 = arith.constant 0 : i32
    %c0_i32_1 = arith.constant 0 : i32
    return %c0_i32, %c0_i32_0 : i32, i32
  }
  func.func @transform_13(%arg0: i32) -> (i32, i32) {
    %c0_i32 = arith.constant 0 : i32
    %c0_i32_0 = arith.constant 0 : i32
    %c0_i32_1 = arith.constant 0 : i32
    return %c0_i32, %c0_i32_0 : i32, i32
  }
  func.func @transform_14(%arg0: i32) -> (i32, i32) {
    %c0_i32 = arith.constant 0 : i32
    %c0_i32_0 = arith.constant 0 : i32
    %c0_i32_1 = arith.constant 0 : i32
    return %c0_i32, %c0_i32_0 : i32, i32
  }
  func.func @transform_15(%arg0: i32) -> (i32, i32) {
    %c0_i32 = arith.constant 0 : i32
    %c0_i32_0 = arith.constant 0 : i32
    %c0_i32_1 = arith.constant 0 : i32
    return %c0_i32, %c0_i32_0 : i32, i32
  }
  func.func @transform_16(%arg0: i32) -> (i32, i32) {
    %c0_i32 = arith.constant 0 : i32
    %c0_i32_0 = arith.constant 0 : i32
    %c0_i32_1 = arith.constant 0 : i32
    return %c0_i32, %c0_i32_0 : i32, i32
  }
  func.func @transform_17(%arg0: i32) -> (i32, i32) {
    %c0_i32 = arith.constant 0 : i32
    %c0_i32_0 = arith.constant 0 : i32
    %c0_i32_1 = arith.constant 0 : i32
    return %c0_i32, %c0_i32_0 : i32, i32
  }
  func.func @transform_18(%arg0: i32) -> (i32, i32) {
    %c0_i32 = arith.constant 0 : i32
    %c0_i32_0 = arith.constant 0 : i32
    %c0_i32_1 = arith.constant 0 : i32
    return %c0_i32, %c0_i32_0 : i32, i32
  }
  func.func @transform_19(%arg0: i32) -> (i32, i32) {
    %c0_i32 = arith.constant 0 : i32
    %c0_i32_0 = arith.constant 0 : i32
    %c0_i32_1 = arith.constant 0 : i32
    return %c0_i32, %c0_i32_0 : i32, i32
  }
  func.func @transform_20(%arg0: i32) -> (i32, i32) {
    %c0_i32 = arith.constant 0 : i32
    %c0_i32_0 = arith.constant 0 : i32
    %c0_i32_1 = arith.constant 0 : i32
    return %c0_i32, %c0_i32_0 : i32, i32
  }
  func.func @transform_21(%arg0: i32) -> (i32, i32) {
    %c0_i32 = arith.constant 0 : i32
    %c0_i32_0 = arith.constant 0 : i32
    %c0_i32_1 = arith.constant 0 : i32
    return %c0_i32, %c0_i32_0 : i32, i32
  }
  func.func @transform_22(%arg0: i32) -> (i32, i32) {
    %c0_i32 = arith.constant 0 : i32
    %c0_i32_0 = arith.constant 0 : i32
    %c0_i32_1 = arith.constant 0 : i32
    return %c0_i32, %c0_i32_0 : i32, i32
  }
  func.func @transform_23(%arg0: i32) -> (i32, i32) {
    %c0_i32 = arith.constant 0 : i32
    %c0_i32_0 = arith.constant 0 : i32
    %c0_i32_1 = arith.constant 0 : i32
    return %c0_i32, %c0_i32_0 : i32, i32
  }
  func.func @transform_24(%arg0: i32) -> (i32, i32) {
    %c0_i32 = arith.constant 0 : i32
    %c0_i32_0 = arith.constant 0 : i32
    %c0_i32_1 = arith.constant 0 : i32
    return %c0_i32, %c0_i32_0 : i32, i32
  }
  func.func @transform_25(%arg0: i32) -> (i32, i32) {
    %c0_i32 = arith.constant 0 : i32
    %c0_i32_0 = arith.constant 0 : i32
    %c0_i32_1 = arith.constant 0 : i32
    return %c0_i32, %c0_i32_0 : i32, i32
  }
  func.func @transform_26(%arg0: i32) -> (i32, i32, i32) {
    %c0_i32 = arith.constant 0 : i32
    %c0_i32_0 = arith.constant 0 : i32
    %c0_i32_1 = arith.constant 0 : i32
    return %arg0, %c0_i32, %c0_i32_0 : i32, i32, i32
  }
}

</mosaic_0001>

<llo_original>
// kernel: tpu_custom_call.1
$region0: #{tpu_custom_call.1}
  #allocation0 [shape = 'u32[]', space=smem, size = 0x4, offset = 0x4, fixed_abs, tag = 'smem constant byte address 0x4 - core index']
  #allocation1 [shape = 'u32[72,128]{1,0:T(1,128)}', space=vmem, size = 0x9000, scoped, tag = 'internal scratch']
  %s0 = inlined_call_operand.vmem [shape: f32[2,16,32], index: 0, kind: input, shape index: {}]
  %s1 = inlined_call_operand.vmem [shape: f32[1,16], index: 1, kind: input, shape index: {}]
  %s2 = inlined_call_operand.hbm [shape: f32[4,16], index: 2, kind: input, shape index: {}]
  %s3 = inlined_call_operand.vmem [shape: f32[32,8], index: 3, kind: input, shape index: {}]
  %s4 = inlined_call_operand.vmem [shape: f32[8,8], index: 4, kind: input, shape index: {}]
  %s5 = inlined_call_operand.hbm [shape: f32[8,8], index: 5, kind: input, shape index: {}]
  %s6 = inlined_call_operand.hbm [shape: f32[8,32], index: 6, kind: input, shape index: {}]
  %s7 = inlined_call_operand.vmem [shape: f32[32,8], index: 7, kind: input, shape index: {}]
  %s8 = inlined_call_operand.vmem [shape: f32[32,4], index: 8, kind: input, shape index: {}]
  %s9 = inlined_call_operand.vmem [shape: f32[8,1], index: 9, kind: input, shape index: {}]
  %s10 = inlined_call_operand.hbm [shape: f32[4,8], index: 10, kind: input, shape index: {}]
  %s11 = inlined_call_operand.vmem [shape: f32[32,8], index: 11, kind: input, shape index: {}]
  %s12 = inlined_call_operand.vmem [shape: f32[16,16], index: 12, kind: input, shape index: {}]
  %s13 = inlined_call_operand.vmem [shape: f32[16,16], index: 13, kind: input, shape index: {}]
  %s14 = inlined_call_operand.vmem [shape: f32[16,16], index: 14, kind: input, shape index: {}]
  %s15 = inlined_call_operand.vmem [shape: f32[16,16], index: 15, kind: input, shape index: {}]
  %s16 = inlined_call_operand.hbm [shape: f32[96,128], index: 16, kind: input, shape index: {}]
  %s17 = inlined_call_operand.vmem [shape: f32[1,128], index: 17, kind: input, shape index: {}]
  %s18 = inlined_call_operand.vmem [shape: f32[128,128], index: 18, kind: input, shape index: {}]
  %s19 = inlined_call_operand.vmem [shape: f32[1,128], index: 19, kind: input, shape index: {}]
  %s20 = inlined_call_operand.vmem [shape: f32[32,128], index: 20, kind: input, shape index: {}]
  %s21 = inlined_call_operand.vmem [shape: f32[1,128], index: 21, kind: input, shape index: {}]
  %s22 = inlined_call_operand.vmem [shape: f32[128,8], index: 22, kind: input, shape index: {}]
  %s23 = inlined_call_operand.vmem [shape: f32[8,128], index: 23, kind: input, shape index: {}]
  %s24 = inlined_call_operand.vmem [shape: f32[1,128], index: 24, kind: input, shape index: {}]
  %s25 = inlined_call_operand.vmem [shape: f32[1,128], index: 25, kind: input, shape index: {}]
  %s26 = inlined_call_operand.hbm [shape: f32[2,16,128], index: 26, kind: output, shape index: {}]
  %s27 = sld [smem:[#allocation0]]
  $region157: #{tpu_custom_call.1} parent=0
    _
  %s29 = ssub.s32 1, %s27
  %s30 = scalar_select 0, %s29, %s27
  $region1: #{tpu_custom_call.1} parent=0
    #allocation2 [shape = 'u8[2048]{0}', space=vmem, size = 0x800, scoped, tag = 'input window, operand 2, single buffered']
    #allocation3 [shape = 's32[2]{0}', space=sflag, size = 0x8, scoped, tag = 'scoped memory for tpu_custom_call.1']
    #allocation4 [shape = 's32[2]{0}', space=sflag, size = 0x8, scoped, tag = 'scoped memory for tpu_custom_call.1']
    #allocation5 [shape = 'u8[4096]{0}', space=vmem, size = 0x1000, scoped, tag = 'input window, operand 5, single buffered']
    #allocation6 [shape = 's32[1]{0}', space=sflag, size = 0x4, scoped, tag = 'scoped memory for tpu_custom_call.1']
    #allocation7 [shape = 'u8[4096]{0}', space=vmem, size = 0x1000, scoped, tag = 'input window, operand 6, single buffered']
    #allocation8 [shape = 'u8[2048]{0}', space=vmem, size = 0x800, scoped, tag = 'input window, operand 10, single buffered']
    #allocation9 [shape = 's32[1]{0}', space=sflag, size = 0x4, scoped, tag = 'scoped memory for tpu_custom_call.1']
    #allocation10 [shape = 'u8[49152]{0}', space=vmem, size = 0xc000, scoped, tag = 'input window, operand 16, single buffered']
    #allocation11 [shape = 'u8[16384]{0}', space=vmem, size = 0x4000, scoped, tag = 'output window, operand 0']
    %31 = vsyncpa [#allocation3], 0
    %32 = vsyncpa [#allocation6], 0
    %33 = vsyncpa [#allocation9], 0
    %34 = vsyncpa [#allocation4], 0
    %s35 = scalar_lea.sflag [#allocation4], 1
    %36 = vsyncpa %s35, 0
    loop: start=0, step=1, limit=4
    $region2: #{tpu_custom_call.1} parent=1 // loop_pre_header
      _
    $region3: #{tpu_custom_call.1} parent=1 // loop_header
      %s38 = sphi 0, %s42
      %p39 = scmp.ge.s32.totalorder %s38, 4
      %s48 = sphi 0, %s50
      %s51 = sphi 0, %s48
      %s52 = sphi 0, %s51
      %s68 = sphi 0, %s52
      %s72 = sphi 0, %s72
      %s74 = sphi 0, %s72
      %s75 = sphi 0, %s74
      %s89 = sphi 0, %s75
      %s93 = sphi 0, %s93
      %s95 = sphi 0, %s93
      %s96 = sphi 0, %s95
      %s110 = sphi 0, %s96
      %s114 = sphi 0, %s114
      %s116 = sphi 0, %s114
      %s117 = sphi 0, %s116
      %s131 = sphi 0, %s117
      %s135 = sphi 0, %s135
      %s137 = sphi 0, %s135
      %s138 = sphi 0, %s137
      %s152 = sphi 0, %s138
      %s156 = sphi 0, %s156
      %s158 = sphi 0, %s156
      %s159 = sphi 0, %s158
      %s173 = sphi 0, %s159
      %s177 = sphi 0, %s177
      %s179 = sphi 0, %s177
      %s180 = sphi 0, %s179
      %s194 = sphi 0, %s180
      %s198 = sphi 0, %s198
      %s200 = sphi 0, %s198
      %s201 = sphi 0, %s200
      %s215 = sphi 0, %s201
      %s219 = sphi 0, %s219
      %s221 = sphi 0, %s219
      %s222 = sphi 0, %s221
      %s236 = sphi 0, %s222
      %s240 = sphi 0, %s240
      %s242 = sphi 0, %s240
      %s243 = sphi 0, %s242
      %s257 = sphi 0, %s243
      %s261 = sphi 0, %s261
      %s263 = sphi 0, %s261
      %s264 = sphi 0, %s263
      %s278 = sphi 0, %s264
      %s282 = sphi 0, %s282
      %s284 = sphi 0, %s282
      %s285 = sphi 0, %s284
      %s299 = sphi 0, %s285
      %s303 = sphi 0, %s303
      %s305 = sphi 0, %s303
      %s306 = sphi 0, %s305
      %s320 = sphi 0, %s306
      %s324 = sphi 0, %s324
      %s326 = sphi 0, %s324
      %s327 = sphi 0, %s326
      %s341 = sphi 0, %s327
      %s345 = sphi 0, %s345
      %s347 = sphi 0, %s345
      %s348 = sphi 0, %s347
      %s362 = sphi 0, %s348
      %s366 = sphi 0, %s366
      %s368 = sphi 0, %s366
      %s369 = sphi 0, %s368
      %s383 = sphi 0, %s369
      %s387 = sphi 0, %s387
      %s389 = sphi 0, %s387
      %s390 = sphi 0, %s389
      %s404 = sphi 0, %s390
      %s408 = sphi 0, %s408
      %s410 = sphi 0, %s408
      %s411 = sphi 0, %s410
      %s425 = sphi 0, %s411
      %s429 = sphi 0, %s429
      %s431 = sphi 0, %s429
      %s432 = sphi 0, %s431
      %s446 = sphi 0, %s432
      %s450 = sphi 0, %s450
      %s452 = sphi 0, %s450
      %s453 = sphi 0, %s452
      %s467 = sphi 0, %s453
      %s471 = sphi 0, %s471
      %s473 = sphi 0, %s471
      %s474 = sphi 0, %s473
      %s488 = sphi 0, %s474
      %s492 = sphi 0, %s492
      %s494 = sphi 0, %s492
      %s495 = sphi 0, %s494
      %s509 = sphi 0, %s495
      %s513 = sphi 0, %s513
      %s515 = sphi 0, %s513
      %s516 = sphi 0, %s515
      %s530 = sphi 0, %s516
      %s534 = sphi 0, %s534
      %s536 = sphi 0, %s534
      %s537 = sphi 0, %s536
      %s551 = sphi 0, %s537
      %s555 = sphi 0, %s555
      %s557 = sphi 0, %s555
      %s558 = sphi 0, %s557
      %s572 = sphi 0, %s558
      %s576 = sphi 0, %s576
      %s578 = sphi 0, %s576
      %s579 = sphi 0, %s578
      %s593 = sphi 0, %s579
      %s599 = sphi 0, %s601
      %s602 = sphi 0, %s599
      %s603 = sphi 0, %s602
      %s619 = sphi 0, %s603
    $region4: #{tpu_custom_call.1} parent=1 // loop_header_branch
      %41 = sbr.rel (%p39) target = $region8
    $region5: #{tpu_custom_call.1} parent=1 // loop_body
      %s43 = ssub.s32 %s38, 1
      %s44 = ssub.s32 %s38, 2
      %s45 = sadd.s32 %s38, 1
      %s46 = ssub.s32 %s38, %s45
      %p47 = scmp.eq.s32.totalorder %s46, 0
      %s49 = sadd.s32 %s48, 1
      %s50 = scalar_select %p47, %s48, %s49
      %p53 = pneg %p47
      %p54 = scmp.eq.s32.totalorder %s38, 1
      %p55 = por %p53, %p54
      %p56 = scmp.ne.s32.totalorder %s48, %s51
      %p57 = scmp.eq.s32.totalorder %s38, 0
      %p58 = por %p56, %p57
      %p59 = scmp.ne.s32.totalorder %s48, %s51
      %p60 = scmp.eq.s32.totalorder %s43, 1
      %p61 = por %p59, %p60
      %p62 = scmp.ne.s32.totalorder %s51, %s52
      %p63 = scmp.eq.s32.totalorder %s43, 0
      %p64 = por %p62, %p63
      %p65 = scmp.ne.s32.totalorder %s51, %s52
      %p66 = scmp.eq.s32.totalorder %s44, 1
      %p67 = por %p65, %p66
      %p69 = scmp.ne.s32.totalorder %s52, %s68
      %p70 = scmp.eq.s32.totalorder %s44, 0
      %p71 = por %p69, %p70
      %s73 = sadd.s32 %s72, 1
      %p76 = scmp.eq.s32.totalorder %s38, 1
      %p77 = scmp.ne.s32.totalorder %s72, %s74
      %p78 = scmp.eq.s32.totalorder %s38, 0
      %p79 = por %p77, %p78
      %p80 = scmp.ne.s32.totalorder %s72, %s74
      %p81 = scmp.eq.s32.totalorder %s43, 1
      %p82 = por %p80, %p81
      %p83 = scmp.ne.s32.totalorder %s74, %s75
      %p84 = scmp.eq.s32.totalorder %s43, 0
      %p85 = por %p83, %p84
      %p86 = scmp.ne.s32.totalorder %s74, %s75
      %p87 = scmp.eq.s32.totalorder %s44, 1
      %p88 = por %p86, %p87
      %p90 = scmp.ne.s32.totalorder %s75, %s89
      %p91 = scmp.eq.s32.totalorder %s44, 0
      %p92 = por %p90, %p91
      %s94 = sadd.s32 %s93, 1
      %p97 = scmp.eq.s32.totalorder %s38, 1
      %p98 = scmp.ne.s32.totalorder %s93, %s95
      %p99 = scmp.eq.s32.totalorder %s38, 0
      %p100 = por %p98, %p99
      %p101 = scmp.ne.s32.totalorder %s93, %s95
      %p102 = scmp.eq.s32.totalorder %s43, 1
      %p103 = por %p101, %p102
      %p104 = scmp.ne.s32.totalorder %s95, %s96
      %p105 = scmp.eq.s32.totalorder %s43, 0
      %p106 = por %p104, %p105
      %p107 = scmp.ne.s32.totalorder %s95, %s96
      %p108 = scmp.eq.s32.totalorder %s44, 1
      %p109 = por %p107, %p108
      %p111 = scmp.ne.s32.totalorder %s96, %s110
      %p112 = scmp.eq.s32.totalorder %s44, 0
      %p113 = por %p111, %p112
      %s115 = sadd.s32 %s114, 1
      %p118 = scmp.eq.s32.totalorder %s38, 1
      %p119 = scmp.ne.s32.totalorder %s114, %s116
      %p120 = scmp.eq.s32.totalorder %s38, 0
      %p121 = por %p119, %p120
      %p122 = scmp.ne.s32.totalorder %s114, %s116
      %p123 = scmp.eq.s32.totalorder %s43, 1
      %p124 = por %p122, %p123
      %p125 = scmp.ne.s32.totalorder %s116, %s117
      %p126 = scmp.eq.s32.totalorder %s43, 0
      %p127 = por %p125, %p126
      %p128 = scmp.ne.s32.totalorder %s116, %s117
      %p129 = scmp.eq.s32.totalorder %s44, 1
      %p130 = por %p128, %p129
      %p132 = scmp.ne.s32.totalorder %s117, %s131
      %p133 = scmp.eq.s32.totalorder %s44, 0
      %p134 = por %p132, %p133
      %s136 = sadd.s32 %s135, 1
      %p139 = scmp.eq.s32.totalorder %s38, 1
      %p140 = scmp.ne.s32.totalorder %s135, %s137
      %p141 = scmp.eq.s32.totalorder %s38, 0
      %p142 = por %p140, %p141
      %p143 = scmp.ne.s32.totalorder %s135, %s137
      %p144 = scmp.eq.s32.totalorder %s43, 1
      %p145 = por %p143, %p144
      %p146 = scmp.ne.s32.totalorder %s137, %s138
      %p147 = scmp.eq.s32.totalorder %s43, 0
      %p148 = por %p146, %p147
      %p149 = scmp.ne.s32.totalorder %s137, %s138
      %p150 = scmp.eq.s32.totalorder %s44, 1
      %p151 = por %p149, %p150
      %p153 = scmp.ne.s32.totalorder %s138, %s152
      %p154 = scmp.eq.s32.totalorder %s44, 0
      %p155 = por %p153, %p154
      %s157 = sadd.s32 %s156, 1
      %p160 = scmp.eq.s32.totalorder %s38, 1
      %p161 = scmp.ne.s32.totalorder %s156, %s158
      %p162 = scmp.eq.s32.totalorder %s38, 0
      %p163 = por %p161, %p162
      %p164 = scmp.ne.s32.totalorder %s156, %s158
      %p165 = scmp.eq.s32.totalorder %s43, 1
      %p166 = por %p164, %p165
      %p167 = scmp.ne.s32.totalorder %s158, %s159
      %p168 = scmp.eq.s32.totalorder %s43, 0
      %p169 = por %p167, %p168
      %p170 = scmp.ne.s32.totalorder %s158, %s159
      %p171 = scmp.eq.s32.totalorder %s44, 1
      %p172 = por %p170, %p171
      %p174 = scmp.ne.s32.totalorder %s159, %s173
      %p175 = scmp.eq.s32.totalorder %s44, 0
      %p176 = por %p174, %p175
      %s178 = sadd.s32 %s177, 1
      %p181 = scmp.eq.s32.totalorder %s38, 1
      %p182 = scmp.ne.s32.totalorder %s177, %s179
      %p183 = scmp.eq.s32.totalorder %s38, 0
      %p184 = por %p182, %p183
      %p185 = scmp.ne.s32.totalorder %s177, %s179
      %p186 = scmp.eq.s32.totalorder %s43, 1
      %p187 = por %p185, %p186
      %p188 = scmp.ne.s32.totalorder %s179, %s180
      %p189 = scmp.eq.s32.totalorder %s43, 0
      %p190 = por %p188, %p189
      %p191 = scmp.ne.s32.totalorder %s179, %s180
      %p192 = scmp.eq.s32.totalorder %s44, 1
      %p193 = por %p191, %p192
      %p195 = scmp.ne.s32.totalorder %s180, %s194
      %p196 = scmp.eq.s32.totalorder %s44, 0
      %p197 = por %p195, %p196
      %s199 = sadd.s32 %s198, 1
      %p202 = scmp.eq.s32.totalorder %s38, 1
      %p203 = scmp.ne.s32.totalorder %s198, %s200
      %p204 = scmp.eq.s32.totalorder %s38, 0
      %p205 = por %p203, %p204
      %p206 = scmp.ne.s32.totalorder %s198, %s200
      %p207 = scmp.eq.s32.totalorder %s43, 1
      %p208 = por %p206, %p207
      %p209 = scmp.ne.s32.totalorder %s200, %s201
      %p210 = scmp.eq.s32.totalorder %s43, 0
      %p211 = por %p209, %p210
      %p212 = scmp.ne.s32.totalorder %s200, %s201
      %p213 = scmp.eq.s32.totalorder %s44, 1
      %p214 = por %p212, %p213
      %p216 = scmp.ne.s32.totalorder %s201, %s215
      %p217 = scmp.eq.s32.totalorder %s44, 0
      %p218 = por %p216, %p217
      %s220 = sadd.s32 %s219, 1
      %p223 = scmp.eq.s32.totalorder %s38, 1
      %p224 = scmp.ne.s32.totalorder %s219, %s221
      %p225 = scmp.eq.s32.totalorder %s38, 0
      %p226 = por %p224, %p225
      %p227 = scmp.ne.s32.totalorder %s219, %s221
      %p228 = scmp.eq.s32.totalorder %s43, 1
      %p229 = por %p227, %p228
      %p230 = scmp.ne.s32.totalorder %s221, %s222
      %p231 = scmp.eq.s32.totalorder %s43, 0
      %p232 = por %p230, %p231
      %p233 = scmp.ne.s32.totalorder %s221, %s222
      %p234 = scmp.eq.s32.totalorder %s44, 1
      %p235 = por %p233, %p234
      %p237 = scmp.ne.s32.totalorder %s222, %s236
      %p238 = scmp.eq.s32.totalorder %s44, 0
      %p239 = por %p237, %p238
      %s241 = sadd.s32 %s240, 1
      %p244 = scmp.eq.s32.totalorder %s38, 1
      %p245 = scmp.ne.s32.totalorder %s240, %s242
      %p246 = scmp.eq.s32.totalorder %s38, 0
      %p247 = por %p245, %p246
      %p248 = scmp.ne.s32.totalorder %s240, %s242
      %p249 = scmp.eq.s32.totalorder %s43, 1
      %p250 = por %p248, %p249
      %p251 = scmp.ne.s32.totalorder %s242, %s243
      %p252 = scmp.eq.s32.totalorder %s43, 0
      %p253 = por %p251, %p252
      %p254 = scmp.ne.s32.totalorder %s242, %s243
      %p255 = scmp.eq.s32.totalorder %s44, 1
      %p256 = por %p254, %p255
      %p258 = scmp.ne.s32.totalorder %s243, %s257
      %p259 = scmp.eq.s32.totalorder %s44, 0
      %p260 = por %p258, %p259
      %s262 = sadd.s32 %s261, 1
      %p265 = scmp.eq.s32.totalorder %s38, 1
      %p266 = scmp.ne.s32.totalorder %s261, %s263
      %p267 = scmp.eq.s32.totalorder %s38, 0
      %p268 = por %p266, %p267
      %p269 = scmp.ne.s32.totalorder %s261, %s263
      %p270 = scmp.eq.s32.totalorder %s43, 1
      %p271 = por %p269, %p270
      %p272 = scmp.ne.s32.totalorder %s263, %s264
      %p273 = scmp.eq.s32.totalorder %s43, 0
      %p274 = por %p272, %p273
      %p275 = scmp.ne.s32.totalorder %s263, %s264
      %p276 = scmp.eq.s32.totalorder %s44, 1
      %p277 = por %p275, %p276
      %p279 = scmp.ne.s32.totalorder %s264, %s278
      %p280 = scmp.eq.s32.totalorder %s44, 0
      %p281 = por %p279, %p280
      %s283 = sadd.s32 %s282, 1
      %p286 = scmp.eq.s32.totalorder %s38, 1
      %p287 = scmp.ne.s32.totalorder %s282, %s284
      %p288 = scmp.eq.s32.totalorder %s38, 0
      %p289 = por %p287, %p288
      %p290 = scmp.ne.s32.totalorder %s282, %s284
      %p291 = scmp.eq.s32.totalorder %s43, 1
      %p292 = por %p290, %p291
      %p293 = scmp.ne.s32.totalorder %s284, %s285
      %p294 = scmp.eq.s32.totalorder %s43, 0
      %p295 = por %p293, %p294
      %p296 = scmp.ne.s32.totalorder %s284, %s285
      %p297 = scmp.eq.s32.totalorder %s44, 1
      %p298 = por %p296, %p297
      %p300 = scmp.ne.s32.totalorder %s285, %s299
      %p301 = scmp.eq.s32.totalorder %s44, 0
      %p302 = por %p300, %p301
      %s304 = sadd.s32 %s303, 1
      %p307 = scmp.eq.s32.totalorder %s38, 1
      %p308 = scmp.ne.s32.totalorder %s303, %s305
      %p309 = scmp.eq.s32.totalorder %s38, 0
      %p310 = por %p308, %p309
      %p311 = scmp.ne.s32.totalorder %s303, %s305
      %p312 = scmp.eq.s32.totalorder %s43, 1
      %p313 = por %p311, %p312
      %p314 = scmp.ne.s32.totalorder %s305, %s306
      %p315 = scmp.eq.s32.totalorder %s43, 0
      %p316 = por %p314, %p315
      %p317 = scmp.ne.s32.totalorder %s305, %s306
      %p318 = scmp.eq.s32.totalorder %s44, 1
      %p319 = por %p317, %p318
      %p321 = scmp.ne.s32.totalorder %s306, %s320
      %p322 = scmp.eq.s32.totalorder %s44, 0
      %p323 = por %p321, %p322
      %s325 = sadd.s32 %s324, 1
      %p328 = scmp.eq.s32.totalorder %s38, 1
      %p329 = scmp.ne.s32.totalorder %s324, %s326
      %p330 = scmp.eq.s32.totalorder %s38, 0
      %p331 = por %p329, %p330
      %p332 = scmp.ne.s32.totalorder %s324, %s326
      %p333 = scmp.eq.s32.totalorder %s43, 1
      %p334 = por %p332, %p333
      %p335 = scmp.ne.s32.totalorder %s326, %s327
      %p336 = scmp.eq.s32.totalorder %s43, 0
      %p337 = por %p335, %p336
      %p338 = scmp.ne.s32.totalorder %s326, %s327
      %p339 = scmp.eq.s32.totalorder %s44, 1
      %p340 = por %p338, %p339
      %p342 = scmp.ne.s32.totalorder %s327, %s341
      %p343 = scmp.eq.s32.totalorder %s44, 0
      %p344 = por %p342, %p343
      %s346 = sadd.s32 %s345, 1
      %p349 = scmp.eq.s32.totalorder %s38, 1
      %p350 = scmp.ne.s32.totalorder %s345, %s347
      %p351 = scmp.eq.s32.totalorder %s38, 0
      %p352 = por %p350, %p351
      %p353 = scmp.ne.s32.totalorder %s345, %s347
      %p354 = scmp.eq.s32.totalorder %s43, 1
      %p355 = por %p353, %p354
      %p356 = scmp.ne.s32.totalorder %s347, %s348
      %p357 = scmp.eq.s32.totalorder %s43, 0
      %p358 = por %p356, %p357
      %p359 = scmp.ne.s32.totalorder %s347, %s348
      %p360 = scmp.eq.s32.totalorder %s44, 1
      %p361 = por %p359, %p360
      %p363 = scmp.ne.s32.totalorder %s348, %s362
      %p364 = scmp.eq.s32.totalorder %s44, 0
      %p365 = por %p363, %p364
      %s367 = sadd.s32 %s366, 1
      %p370 = scmp.eq.s32.totalorder %s38, 1
      %p371 = scmp.ne.s32.totalorder %s366, %s368
      %p372 = scmp.eq.s32.totalorder %s38, 0
      %p373 = por %p371, %p372
      %p374 = scmp.ne.s32.totalorder %s366, %s368
      %p375 = scmp.eq.s32.totalorder %s43, 1
      %p376 = por %p374, %p375
      %p377 = scmp.ne.s32.totalorder %s368, %s369
      %p378 = scmp.eq.s32.totalorder %s43, 0
      %p379 = por %p377, %p378
      %p380 = scmp.ne.s32.totalorder %s368, %s369
      %p381 = scmp.eq.s32.totalorder %s44, 1
      %p382 = por %p380, %p381
      %p384 = scmp.ne.s32.totalorder %s369, %s383
      %p385 = scmp.eq.s32.totalorder %s44, 0
      %p386 = por %p384, %p385
      %s388 = sadd.s32 %s387, 1
      %p391 = scmp.eq.s32.totalorder %s38, 1
      %p392 = scmp.ne.s32.totalorder %s387, %s389
      %p393 = scmp.eq.s32.totalorder %s38, 0
      %p394 = por %p392, %p393
      %p395 = scmp.ne.s32.totalorder %s387, %s389
      %p396 = scmp.eq.s32.totalorder %s43, 1
      %p397 = por %p395, %p396
      %p398 = scmp.ne.s32.totalorder %s389, %s390
      %p399 = scmp.eq.s32.totalorder %s43, 0
      %p400 = por %p398, %p399
      %p401 = scmp.ne.s32.totalorder %s389, %s390
      %p402 = scmp.eq.s32.totalorder %s44, 1
      %p403 = por %p401, %p402
      %p405 = scmp.ne.s32.totalorder %s390, %s404
      %p406 = scmp.eq.s32.totalorder %s44, 0
      %p407 = por %p405, %p406
      %s409 = sadd.s32 %s408, 1
      %p412 = scmp.eq.s32.totalorder %s38, 1
      %p413 = scmp.ne.s32.totalorder %s408, %s410
      %p414 = scmp.eq.s32.totalorder %s38, 0
      %p415 = por %p413, %p414
      %p416 = scmp.ne.s32.totalorder %s408, %s410
      %p417 = scmp.eq.s32.totalorder %s43, 1
      %p418 = por %p416, %p417
      %p419 = scmp.ne.s32.totalorder %s410, %s411
      %p420 = scmp.eq.s32.totalorder %s43, 0
      %p421 = por %p419, %p420
      %p422 = scmp.ne.s32.totalorder %s410, %s411
      %p423 = scmp.eq.s32.totalorder %s44, 1
      %p424 = por %p422, %p423
      %p426 = scmp.ne.s32.totalorder %s411, %s425
      %p427 = scmp.eq.s32.totalorder %s44, 0
      %p428 = por %p426, %p427
      %s430 = sadd.s32 %s429, 1
      %p433 = scmp.eq.s32.totalorder %s38, 1
      %p434 = scmp.ne.s32.totalorder %s429, %s431
      %p435 = scmp.eq.s32.totalorder %s38, 0
      %p436 = por %p434, %p435
      %p437 = scmp.ne.s32.totalorder %s429, %s431
      %p438 = scmp.eq.s32.totalorder %s43, 1
      %p439 = por %p437, %p438
      %p440 = scmp.ne.s32.totalorder %s431, %s432
      %p441 = scmp.eq.s32.totalorder %s43, 0
      %p442 = por %p440, %p441
      %p443 = scmp.ne.s32.totalorder %s431, %s432
      %p444 = scmp.eq.s32.totalorder %s44, 1
      %p445 = por %p443, %p444
      %p447 = scmp.ne.s32.totalorder %s432, %s446
      %p448 = scmp.eq.s32.totalorder %s44, 0
      %p449 = por %p447, %p448
      %s451 = sadd.s32 %s450, 1
      %p454 = scmp.eq.s32.totalorder %s38, 1
      %p455 = scmp.ne.s32.totalorder %s450, %s452
      %p456 = scmp.eq.s32.totalorder %s38, 0
      %p457 = por %p455, %p456
      %p458 = scmp.ne.s32.totalorder %s450, %s452
      %p459 = scmp.eq.s32.totalorder %s43, 1
      %p460 = por %p458, %p459
      %p461 = scmp.ne.s32.totalorder %s452, %s453
      %p462 = scmp.eq.s32.totalorder %s43, 0
      %p463 = por %p461, %p462
      %p464 = scmp.ne.s32.totalorder %s452, %s453
      %p465 = scmp.eq.s32.totalorder %s44, 1
      %p466 = por %p464, %p465
      %p468 = scmp.ne.s32.totalorder %s453, %s467
      %p469 = scmp.eq.s32.totalorder %s44, 0
      %p470 = por %p468, %p469
      %s472 = sadd.s32 %s471, 1
      %p475 = scmp.eq.s32.totalorder %s38, 1
      %p476 = scmp.ne.s32.totalorder %s471, %s473
      %p477 = scmp.eq.s32.totalorder %s38, 0
      %p478 = por %p476, %p477
      %p479 = scmp.ne.s32.totalorder %s471, %s473
      %p480 = scmp.eq.s32.totalorder %s43, 1
      %p481 = por %p479, %p480
      %p482 = scmp.ne.s32.totalorder %s473, %s474
      %p483 = scmp.eq.s32.totalorder %s43, 0
      %p484 = por %p482, %p483
      %p485 = scmp.ne.s32.totalorder %s473, %s474
      %p486 = scmp.eq.s32.totalorder %s44, 1
      %p487 = por %p485, %p486
      %p489 = scmp.ne.s32.totalorder %s474, %s488
      %p490 = scmp.eq.s32.totalorder %s44, 0
      %p491 = por %p489, %p490
      %s493 = sadd.s32 %s492, 1
      %p496 = scmp.eq.s32.totalorder %s38, 1
      %p497 = scmp.ne.s32.totalorder %s492, %s494
      %p498 = scmp.eq.s32.totalorder %s38, 0
      %p499 = por %p497, %p498
      %p500 = scmp.ne.s32.totalorder %s492, %s494
      %p501 = scmp.eq.s32.totalorder %s43, 1
      %p502 = por %p500, %p501
      %p503 = scmp.ne.s32.totalorder %s494, %s495
      %p504 = scmp.eq.s32.totalorder %s43, 0
      %p505 = por %p503, %p504
      %p506 = scmp.ne.s32.totalorder %s494, %s495
      %p507 = scmp.eq.s32.totalorder %s44, 1
      %p508 = por %p506, %p507
      %p510 = scmp.ne.s32.totalorder %s495, %s509
      %p511 = scmp.eq.s32.totalorder %s44, 0
      %p512 = por %p510, %p511
      %s514 = sadd.s32 %s513, 1
      %p517 = scmp.eq.s32.totalorder %s38, 1
      %p518 = scmp.ne.s32.totalorder %s513, %s515
      %p519 = scmp.eq.s32.totalorder %s38, 0
      %p520 = por %p518, %p519
      %p521 = scmp.ne.s32.totalorder %s513, %s515
      %p522 = scmp.eq.s32.totalorder %s43, 1
      %p523 = por %p521, %p522
      %p524 = scmp.ne.s32.totalorder %s515, %s516
      %p525 = scmp.eq.s32.totalorder %s43, 0
      %p526 = por %p524, %p525
      %p527 = scmp.ne.s32.totalorder %s515, %s516
      %p528 = scmp.eq.s32.totalorder %s44, 1
      %p529 = por %p527, %p528
      %p531 = scmp.ne.s32.totalorder %s516, %s530
      %p532 = scmp.eq.s32.totalorder %s44, 0
      %p533 = por %p531, %p532
      %s535 = sadd.s32 %s534, 1
      %p538 = scmp.eq.s32.totalorder %s38, 1
      %p539 = scmp.ne.s32.totalorder %s534, %s536
      %p540 = scmp.eq.s32.totalorder %s38, 0
      %p541 = por %p539, %p540
      %p542 = scmp.ne.s32.totalorder %s534, %s536
      %p543 = scmp.eq.s32.totalorder %s43, 1
      %p544 = por %p542, %p543
      %p545 = scmp.ne.s32.totalorder %s536, %s537
      %p546 = scmp.eq.s32.totalorder %s43, 0
      %p547 = por %p545, %p546
      %p548 = scmp.ne.s32.totalorder %s536, %s537
      %p549 = scmp.eq.s32.totalorder %s44, 1
      %p550 = por %p548, %p549
      %p552 = scmp.ne.s32.totalorder %s537, %s551
      %p553 = scmp.eq.s32.totalorder %s44, 0
      %p554 = por %p552, %p553
      %s556 = sadd.s32 %s555, 1
      %p559 = scmp.eq.s32.totalorder %s38, 1
      %p560 = scmp.ne.s32.totalorder %s555, %s557
      %p561 = scmp.eq.s32.totalorder %s38, 0
      %p562 = por %p560, %p561
      %p563 = scmp.ne.s32.totalorder %s555, %s557
      %p564 = scmp.eq.s32.totalorder %s43, 1
      %p565 = por %p563, %p564
      %p566 = scmp.ne.s32.totalorder %s557, %s558
      %p567 = scmp.eq.s32.totalorder %s43, 0
      %p568 = por %p566, %p567
      %p569 = scmp.ne.s32.totalorder %s557, %s558
      %p570 = scmp.eq.s32.totalorder %s44, 1
      %p571 = por %p569, %p570
      %p573 = scmp.ne.s32.totalorder %s558, %s572
      %p574 = scmp.eq.s32.totalorder %s44, 0
      %p575 = por %p573, %p574
      %s577 = sadd.s32 %s576, 1
      %p580 = scmp.eq.s32.totalorder %s38, 1
      %p581 = scmp.ne.s32.totalorder %s576, %s578
      %p582 = scmp.eq.s32.totalorder %s38, 0
      %p583 = por %p581, %p582
      %p584 = scmp.ne.s32.totalorder %s576, %s578
      %p585 = scmp.eq.s32.totalorder %s43, 1
      %p586 = por %p584, %p585
      %p587 = scmp.ne.s32.totalorder %s578, %s579
      %p588 = scmp.eq.s32.totalorder %s43, 0
      %p589 = por %p587, %p588
      %p590 = scmp.ne.s32.totalorder %s578, %s579
      %p591 = scmp.eq.s32.totalorder %s44, 1
      %p592 = por %p590, %p591
      %p594 = scmp.ne.s32.totalorder %s579, %s593
      %p595 = scmp.eq.s32.totalorder %s44, 0
      %p596 = por %p594, %p595
      %s597 = ssub.s32 %s38, %s45
      %p598 = scmp.eq.s32.totalorder %s597, 0
      %s600 = sadd.s32 %s599, 1
      %s601 = scalar_select %p598, %s599, %s600
      %p604 = pneg %p598
      %p605 = scmp.eq.s32.totalorder %s38, 1
      %p606 = por %p604, %p605
      %p607 = scmp.ne.s32.totalorder %s599, %s602
      %p608 = scmp.eq.s32.totalorder %s38, 0
      %p609 = por %p607, %p608
      %p610 = scmp.ne.s32.totalorder %s599, %s602
      %p611 = scmp.eq.s32.totalorder %s43, 1
      %p612 = por %p610, %p611
      %p613 = scmp.ne.s32.totalorder %s602, %s603
      %p614 = scmp.eq.s32.totalorder %s43, 0
      %p615 = por %p613, %p614
      %p616 = scmp.ne.s32.totalorder %s602, %s603
      %p617 = scmp.eq.s32.totalorder %s44, 1
      %p618 = por %p616, %p617
      %p620 = scmp.ne.s32.totalorder %s603, %s619
      %p621 = scmp.eq.s32.totalorder %s44, 0
      %p622 = por %p620, %p621
      %p623 = scmp.le.s32.totalorder 1, %s38
      %p624 = scmp.lt.s32.totalorder %s38, 3
      %p625 = pnand %p623, %p624
      %p626 = pneg %p625
      // Predicated region
      $region9: #{tpu_custom_call.1} parent=5 // pred_check
        _
      $region10: #{tpu_custom_call.1} parent=5 // pred_check_branch
        %628 = sbr.rel (%p625) target = $region12
      $region11: #{tpu_custom_call.1} parent=5 // pred_region
        %s629 = ssub.s32 %s38, 1
        // Predicated region
        $region13: #{tpu_custom_call.1} parent=11 // pred_check
          %p630 = pneg %p85
        $region14: #{tpu_custom_call.1} parent=11 // pred_check_branch
          %632 = sbr.rel (%p630) target = $region16
        $region15: #{tpu_custom_call.1} parent=11 // pred_region
          _
        $region16: #{tpu_custom_call.1} parent=11 // pred_fallthru
          _
        // Predicated region
        $region17: #{tpu_custom_call.1} parent=11 // pred_check
          %p633 = pneg %p106
        $region18: #{tpu_custom_call.1} parent=11 // pred_check_branch
          %635 = sbr.rel (%p633) target = $region20
        $region19: #{tpu_custom_call.1} parent=11 // pred_region
          %637 = vsyncadd [#allocation3], 0
          %s639 = sshll.u32 %s2, 4
          %s640 = int_to_ptr.hbm [resolvable:$true] %s639
          %s641 = sshll.u32 [#allocation2], 4
          %s642 = int_to_ptr.vmem [resolvable:$true] %s641
          %644 = dma.hbm_to_vmem [thread:$0]  %s640, 64, %s642, [#allocation3]
        $region20: #{tpu_custom_call.1} parent=11 // pred_fallthru
          _
        // Predicated region
        $region21: #{tpu_custom_call.1} parent=11 // pred_check
          %p645 = pneg %p127
        $region22: #{tpu_custom_call.1} parent=11 // pred_check_branch
          %647 = sbr.rel (%p645) target = $region24
        $region23: #{tpu_custom_call.1} parent=11 // pred_region
          _
        $region24: #{tpu_custom_call.1} parent=11 // pred_fallthru
          _
        // Predicated region
        $region25: #{tpu_custom_call.1} parent=11 // pred_check
          %p648 = pneg %p148
        $region26: #{tpu_custom_call.1} parent=11 // pred_check_branch
          %650 = sbr.rel (%p648) target = $region28
        $region27: #{tpu_custom_call.1} parent=11 // pred_region
          _
        $region28: #{tpu_custom_call.1} parent=11 // pred_fallthru
          _
        // Predicated region
        $region29: #{tpu_custom_call.1} parent=11 // pred_check
          %p651 = pneg %p169
        $region30: #{tpu_custom_call.1} parent=11 // pred_check_branch
          %653 = sbr.rel (%p651) target = $region32
        $region31: #{tpu_custom_call.1} parent=11 // pred_region
          %655 = vsyncadd [#allocation6], 0
          %s657 = sshll.u32 %s5, 4
          %s658 = int_to_ptr.hbm [resolvable:$true] %s657
          %s659 = sshll.u32 [#allocation5], 4
          %s660 = int_to_ptr.vmem [resolvable:$true] %s659
          %662 = dma.hbm_to_vmem [thread:$0]  %s658, 128, %s660, [#allocation6]
        $region32: #{tpu_custom_call.1} parent=11 // pred_fallthru
          _
        // Predicated region
        $region33: #{tpu_custom_call.1} parent=11 // pred_check
          %p663 = pneg %p190
        $region34: #{tpu_custom_call.1} parent=11 // pred_check_branch
          %665 = sbr.rel (%p663) target = $region36
        $region35: #{tpu_custom_call.1} parent=11 // pred_region
          %667 = vsyncadd [#allocation6], 0
          %s669 = sshll.u32 %s6, 4
          %s670 = int_to_ptr.hbm [resolvable:$true] %s669
          %s671 = sshll.u32 [#allocation7], 4
          %s672 = int_to_ptr.vmem [resolvable:$true] %s671
          %674 = dma.hbm_to_vmem [thread:$0]  %s670, 128, %s672, [#allocation6]
        $region36: #{tpu_custom_call.1} parent=11 // pred_fallthru
          _
        // Predicated region
        $region37: #{tpu_custom_call.1} parent=11 // pred_check
          %p675 = pneg %p211
        $region38: #{tpu_custom_call.1} parent=11 // pred_check_branch
          %677 = sbr.rel (%p675) target = $region40
        $region39: #{tpu_custom_call.1} parent=11 // pred_region
          _
        $region40: #{tpu_custom_call.1} parent=11 // pred_fallthru
          _
        // Predicated region
        $region41: #{tpu_custom_call.1} parent=11 // pred_check
          %p678 = pneg %p232
        $region42: #{tpu_custom_call.1} parent=11 // pred_check_branch
          %680 = sbr.rel (%p678) target = $region44
        $region43: #{tpu_custom_call.1} parent=11 // pred_region
          _
        $region44: #{tpu_custom_call.1} parent=11 // pred_fallthru
          _
        // Predicated region
        $region45: #{tpu_custom_call.1} parent=11 // pred_check
          %p681 = pneg %p253
        $region46: #{tpu_custom_call.1} parent=11 // pred_check_branch
          %683 = sbr.rel (%p681) target = $region48
        $region47: #{tpu_custom_call.1} parent=11 // pred_region
          _
        $region48: #{tpu_custom_call.1} parent=11 // pred_fallthru
          _
        // Predicated region
        $region49: #{tpu_custom_call.1} parent=11 // pred_check
          %p684 = pneg %p274
        $region50: #{tpu_custom_call.1} parent=11 // pred_check_branch
          %686 = sbr.rel (%p684) target = $region52
        $region51: #{tpu_custom_call.1} parent=11 // pred_region
          %688 = vsyncadd [#allocation9], 0
          %s690 = sshll.u32 %s10, 4
          %s691 = int_to_ptr.hbm [resolvable:$true] %s690
          %s692 = sshll.u32 [#allocation8], 4
          %s693 = int_to_ptr.vmem [resolvable:$true] %s692
          %695 = dma.hbm_to_vmem [thread:$0]  %s691, 64, %s693, [#allocation9]
        $region52: #{tpu_custom_call.1} parent=11 // pred_fallthru
          _
        // Predicated region
        $region53: #{tpu_custom_call.1} parent=11 // pred_check
          %p696 = pneg %p295
        $region54: #{tpu_custom_call.1} parent=11 // pred_check_branch
          %698 = sbr.rel (%p696) target = $region56
        $region55: #{tpu_custom_call.1} parent=11 // pred_region
          _
        $region56: #{tpu_custom_call.1} parent=11 // pred_fallthru
          _
        // Predicated region
        $region57: #{tpu_custom_call.1} parent=11 // pred_check
          %p699 = pneg %p316
        $region58: #{tpu_custom_call.1} parent=11 // pred_check_branch
          %701 = sbr.rel (%p699) target = $region60
        $region59: #{tpu_custom_call.1} parent=11 // pred_region
          _
        $region60: #{tpu_custom_call.1} parent=11 // pred_fallthru
          _
        // Predicated region
        $region61: #{tpu_custom_call.1} parent=11 // pred_check
          %p702 = pneg %p337
        $region62: #{tpu_custom_call.1} parent=11 // pred_check_branch
          %704 = sbr.rel (%p702) target = $region64
        $region63: #{tpu_custom_call.1} parent=11 // pred_region
          _
        $region64: #{tpu_custom_call.1} parent=11 // pred_fallthru
          _
        // Predicated region
        $region65: #{tpu_custom_call.1} parent=11 // pred_check
          %p705 = pneg %p358
        $region66: #{tpu_custom_call.1} parent=11 // pred_check_branch
          %707 = sbr.rel (%p705) target = $region68
        $region67: #{tpu_custom_call.1} parent=11 // pred_region
          _
        $region68: #{tpu_custom_call.1} parent=11 // pred_fallthru
          _
        // Predicated region
        $region69: #{tpu_custom_call.1} parent=11 // pred_check
          %p708 = pneg %p379
        $region70: #{tpu_custom_call.1} parent=11 // pred_check_branch
          %710 = sbr.rel (%p708) target = $region72
        $region71: #{tpu_custom_call.1} parent=11 // pred_region
          _
        $region72: #{tpu_custom_call.1} parent=11 // pred_fallthru
          _
        // Predicated region
        $region73: #{tpu_custom_call.1} parent=11 // pred_check
          %p711 = pneg %p400
        $region74: #{tpu_custom_call.1} parent=11 // pred_check_branch
          %713 = sbr.rel (%p711) target = $region76
        $region75: #{tpu_custom_call.1} parent=11 // pred_region
          %715 = vsyncadd [#allocation9], 0
          %s716 = sshll.u32 %s16, 4
          %s717 = int_to_ptr.hbm [resolvable:$true] %s716
          %s718 = sshll.u32 [#allocation10], 4
          %s719 = int_to_ptr.vmem [resolvable:$true] %s718
          %724 = dma.hbm_to_vmem [thread:$0]  %s717, 1536, %s719, [#allocation9], 128, 128, 8
        $region76: #{tpu_custom_call.1} parent=11 // pred_fallthru
          _
        // Predicated region
        $region77: #{tpu_custom_call.1} parent=11 // pred_check
          %p725 = pneg %p421
        $region78: #{tpu_custom_call.1} parent=11 // pred_check_branch
          %727 = sbr.rel (%p725) target = $region80
        $region79: #{tpu_custom_call.1} parent=11 // pred_region
          _
        $region80: #{tpu_custom_call.1} parent=11 // pred_fallthru
          _
        // Predicated region
        $region81: #{tpu_custom_call.1} parent=11 // pred_check
          %p728 = pneg %p442
        $region82: #{tpu_custom_call.1} parent=11 // pred_check_branch
          %730 = sbr.rel (%p728) target = $region84
        $region83: #{tpu_custom_call.1} parent=11 // pred_region
          _
        $region84: #{tpu_custom_call.1} parent=11 // pred_fallthru
          _
        // Predicated region
        $region85: #{tpu_custom_call.1} parent=11 // pred_check
          %p731 = pneg %p463
        $region86: #{tpu_custom_call.1} parent=11 // pred_check_branch
          %733 = sbr.rel (%p731) target = $region88
        $region87: #{tpu_custom_call.1} parent=11 // pred_region
          _
        $region88: #{tpu_custom_call.1} parent=11 // pred_fallthru
          _
        // Predicated region
        $region89: #{tpu_custom_call.1} parent=11 // pred_check
          %p734 = pneg %p484
        $region90: #{tpu_custom_call.1} parent=11 // pred_check_branch
          %736 = sbr.rel (%p734) target = $region92
        $region91: #{tpu_custom_call.1} parent=11 // pred_region
          _
        $region92: #{tpu_custom_call.1} parent=11 // pred_fallthru
          _
        // Predicated region
        $region93: #{tpu_custom_call.1} parent=11 // pred_check
          %p737 = pneg %p505
        $region94: #{tpu_custom_call.1} parent=11 // pred_check_branch
          %739 = sbr.rel (%p737) target = $region96
        $region95: #{tpu_custom_call.1} parent=11 // pred_region
          _
        $region96: #{tpu_custom_call.1} parent=11 // pred_fallthru
          _
        // Predicated region
        $region97: #{tpu_custom_call.1} parent=11 // pred_check
          %p740 = pneg %p526
        $region98: #{tpu_custom_call.1} parent=11 // pred_check_branch
          %742 = sbr.rel (%p740) target = $region100
        $region99: #{tpu_custom_call.1} parent=11 // pred_region
          _
        $region100: #{tpu_custom_call.1} parent=11 // pred_fallthru
          _
        // Predicated region
        $region101: #{tpu_custom_call.1} parent=11 // pred_check
          %p743 = pneg %p547
        $region102: #{tpu_custom_call.1} parent=11 // pred_check_branch
          %745 = sbr.rel (%p743) target = $region104
        $region103: #{tpu_custom_call.1} parent=11 // pred_region
          _
        $region104: #{tpu_custom_call.1} parent=11 // pred_fallthru
          _
        // Predicated region
        $region105: #{tpu_custom_call.1} parent=11 // pred_check
          %p746 = pneg %p568
        $region106: #{tpu_custom_call.1} parent=11 // pred_check_branch
          %748 = sbr.rel (%p746) target = $region108
        $region107: #{tpu_custom_call.1} parent=11 // pred_region
          _
        $region108: #{tpu_custom_call.1} parent=11 // pred_fallthru
          _
        // Predicated region
        $region109: #{tpu_custom_call.1} parent=11 // pred_check
          %p749 = pneg %p589
        $region110: #{tpu_custom_call.1} parent=11 // pred_check_branch
          %751 = sbr.rel (%p749) target = $region112
        $region111: #{tpu_custom_call.1} parent=11 // pred_region
          _
        $region112: #{tpu_custom_call.1} parent=11 // pred_fallthru
          _
      $region12: #{tpu_custom_call.1} parent=5 // pred_fallthru
        _
      %p752 = scmp.lt.s32.totalorder %s38, 2
      // Predicated region
      $region113: #{tpu_custom_call.1} parent=5 // pred_check
        %p753 = pneg %p752
      $region114: #{tpu_custom_call.1} parent=5 // pred_check_branch
        %755 = sbr.rel (%p753) target = $region116
      $region115: #{tpu_custom_call.1} parent=5 // pred_region
        // Predicated region
        $region117: #{tpu_custom_call.1} parent=115 // pred_check
          %p756 = pneg %p58
        $region118: #{tpu_custom_call.1} parent=115 // pred_check_branch
          %758 = sbr.rel (%p756) target = $region120
        $region119: #{tpu_custom_call.1} parent=115 // pred_region
          %p759 = scmp.lt.s32.totalorder %s38, 1
          %s760 = scalar_select %p759, %s38, 1
          %s761 = smul.addr %s760, 2
          %s762 = smul.addr %s761, 8
          %s763 = scalar_lea.vmem %s0, %s762
        $region120: #{tpu_custom_call.1} parent=115 // pred_fallthru
          _
      $region116: #{tpu_custom_call.1} parent=5 // pred_fallthru
        _
      %p764 = scmp.le.s32.totalorder 1, %s38
      %p765 = scmp.lt.s32.totalorder %s38, 3
      %p766 = pnand %p764, %p765
      %p767 = pneg %p766
      // Predicated region
      $region121: #{tpu_custom_call.1} parent=5 // pred_check
        _
      $region122: #{tpu_custom_call.1} parent=5 // pred_check_branch
        %769 = sbr.rel (%p766) target = $region124
      $region123: #{tpu_custom_call.1} parent=5 // pred_region
        %s770 = ssub.s32 %s38, 1
        // Predicated region
        $region125: #{tpu_custom_call.1} parent=123 // pred_check
          %p771 = pneg %p106
        $region126: #{tpu_custom_call.1} parent=123 // pred_check_branch
          %773 = sbr.rel (%p771) target = $region128
        $region127: #{tpu_custom_call.1} parent=123 // pred_region
          %775 = dma.done [#allocation3], 64
        $region128: #{tpu_custom_call.1} parent=123 // pred_fallthru
          _
        // Predicated region
        $region129: #{tpu_custom_call.1} parent=123 // pred_check
          %p776 = pneg %p169
        $region130: #{tpu_custom_call.1} parent=123 // pred_check_branch
          %778 = sbr.rel (%p776) target = $region132
        $region131: #{tpu_custom_call.1} parent=123 // pred_region
          %780 = dma.done [#allocation6], 128
        $region132: #{tpu_custom_call.1} parent=123 // pred_fallthru
          _
        // Predicated region
        $region133: #{tpu_custom_call.1} parent=123 // pred_check
          %p781 = pneg %p190
        $region134: #{tpu_custom_call.1} parent=123 // pred_check_branch
          %783 = sbr.rel (%p781) target = $region136
        $region135: #{tpu_custom_call.1} parent=123 // pred_region
          %785 = dma.done [#allocation6], 128
        $region136: #{tpu_custom_call.1} parent=123 // pred_fallthru
          _
        // Predicated region
        $region137: #{tpu_custom_call.1} parent=123 // pred_check
          %p786 = pneg %p274
        $region138: #{tpu_custom_call.1} parent=123 // pred_check_branch
          %788 = sbr.rel (%p786) target = $region140
        $region139: #{tpu_custom_call.1} parent=123 // pred_region
          %790 = dma.done [#allocation9], 64
        $region140: #{tpu_custom_call.1} parent=123 // pred_fallthru
          _
        // Predicated region
        $region141: #{tpu_custom_call.1} parent=123 // pred_check
          %p791 = pneg %p400
        $region142: #{tpu_custom_call.1} parent=123 // pred_check_branch
          %793 = sbr.rel (%p791) target = $region144
        $region143: #{tpu_custom_call.1} parent=123 // pred_region
          %795 = dma.done [#allocation9], 1536
        $region144: #{tpu_custom_call.1} parent=123 // pred_fallthru
          _
        %p796 = scmp.lt.s32.totalorder %s43, 1
        %s797 = scalar_select %p796, %s43, 1
        %s798 = smul.addr %s797, 2
        %s799 = smul.addr %s798, 8
        %s800 = scalar_lea.vmem %s0, %s799
        %p801 = pneg %p64
        %p802 = pneg %p61
        %p803 = pneg %p85
        %p804 = pneg %p82
        %p805 = pneg %p106
        %p806 = pneg %p103
        %p807 = pneg %p127
        %p808 = pneg %p124
        %p809 = pneg %p148
        %p810 = pneg %p145
        %p811 = pneg %p169
        %p812 = pneg %p166
        %p813 = pneg %p190
        %p814 = pneg %p187
        %p815 = pneg %p211
        %p816 = pneg %p208
        %p817 = pneg %p232
        %p818 = pneg %p229
        %p819 = pneg %p253
        %p820 = pneg %p250
        %p821 = pneg %p274
        %p822 = pneg %p271
        %p823 = pneg %p295
        %p824 = pneg %p292
        %p825 = pneg %p316
        %p826 = pneg %p313
        %p827 = pneg %p337
        %p828 = pneg %p334
        %p829 = pneg %p358
        %p830 = pneg %p355
        %p831 = pneg %p379
        %p832 = pneg %p376
        %p833 = pneg %p400
        %p834 = pneg %p397
        %p835 = pneg %p421
        %p836 = pneg %p418
        %p837 = pneg %p442
        %p838 = pneg %p439
        %p839 = pneg %p463
        %p840 = pneg %p460
        %p841 = pneg %p484
        %p842 = pneg %p481
        %p843 = pneg %p505
        %p844 = pneg %p502
        %p845 = pneg %p526
        %p846 = pneg %p523
        %p847 = pneg %p547
        %p848 = pneg %p544
        %p849 = pneg %p568
        %p850 = pneg %p565
        %p851 = pneg %p589
        %p852 = pneg %p586
        %p853 = pneg %p615
        %p854 = pneg %p612
        %s855 = sand.u32 %s602, 1
        %s856 = scalar_lea.sflag [#allocation4], %s855
        %s857 = sand.u32 %s602, 1
        %s858 = smul.addr %s857, 16
        %s859 = scalar_lea.vmem [#allocation11], %s858
        %p860 = scmp.lt.s32.totalorder %s43, 1
        %s861 = scalar_select %p860, %s43, 1
        %s862 = smul.addr %s861, 2
        %s863 = smul.addr %s862, 8
        %s864 = scalar_lea.vmem %s0, %s863
        %v865 = vld [vmem:[%s864] sm:$0xff]
        %v866 = vld [vmem:[%s864 + $0x8] sm:$0xff]
        %v867 = vld [vmem:[%s1] sm:$0x1]
        %vm868 = vcmask 130048
        %v870 = vsel %vm868, %v867, 0
        %872 = vmatpush.msra.mxu0 0.0
        %873 = vmatpush.msra.mxu0 0.0
        %874 = vmatpush.msra.mxu0 0.0
        %875 = vmatpush.msra.mxu0 0.0
        %876 = vmatpush.msra.mxu0 0.0
        %877 = vmatpush.msra.mxu0 0.0
        %878 = vmatpush.msra.mxu0 0.0
        %879 = vmatpush.msra.mxu0 0.0
        %880 = vmatpush.msra.mxu0 0.0
        %881 = vmatpush.msra.mxu0 0.0
        %882 = vmatpush.msra.mxu0 0.0
        %883 = vmatpush.msra.mxu0 0.0
        %884 = vmatpush.msra.mxu0 0.0
        %885 = vmatpush.msra.mxu0 0.0
        %886 = vmatpush.msra.mxu0 %v866
        %887 = vmatpush.msra.mxu0 %v865
        %888 = vmatmul.f32.gmra.mxu0 %v870
        %v889 = vpop.f32.mrf.mxu0
        %v890 = vadd.f32 0.0, %v889
        %891 = vdwg.mxu0
        %v892 = vld [vmem:[#allocation7] sm:$0xff]
        %v893 = vperm.slane %v890, 0
        %v894 = vmul.f32 %v893, %v892
        %v895 = vld [vmem:[%s8] sm:$0xff]
        %v896 = vld [vmem:[%s8 + $0x8] sm:$0xff]
        %v897 = vld [vmem:[%s8 + $0x10] sm:$0xff]
        %v898 = vld [vmem:[%s8 + $0x18] sm:$0xff]
        %vm899 = vcmask 261120
        %v901 = vsel %vm899, %v894, 0
        %903 = vmatpush.msra.mxu0 0.0
        %904 = vmatpush.msra.mxu0 0.0
        %905 = vmatpush.msra.mxu0 0.0
        %906 = vmatpush.msra.mxu0 0.0
        %907 = vmatpush.msra.mxu0 0.0
        %908 = vmatpush.msra.mxu0 0.0
        %909 = vmatpush.msra.mxu0 0.0
        %910 = vmatpush.msra.mxu0 0.0
        %911 = vmatpush.msra.mxu0 0.0
        %912 = vmatpush.msra.mxu0 0.0
        %913 = vmatpush.msra.mxu0 0.0
        %914 = vmatpush.msra.mxu0 0.0
        %915 = vmatpush.msra.mxu0 %v898
        %916 = vmatpush.msra.mxu0 %v897
        %917 = vmatpush.msra.mxu0 %v896
        %918 = vmatpush.msra.mxu0 %v895
        %919 = vmatmul.f32.gmra.mxu0 %v901
        %v920 = vpop.f32.mrf.mxu0
        %v921 = vadd.f32 0.0, %v920
        %922 = vdwg.mxu0
        %v923 = vld [vmem:[#allocation2] sm:$0xf]
        %vm924 = vcmask 31744
        %v926 = vsel %vm924, %v921, 0
        %vm928 = vcmask 1043456
        %v930 = vsel %vm928, %v923, 0
        %932 = vmatpush.msra.mxu0 0.0
        %933 = vmatpush.msra.mxu0 0.0
        %934 = vmatpush.msra.mxu0 0.0
        %935 = vmatpush.msra.mxu0 0.0
        %936 = vmatpush.msra.mxu0 0.0
        %937 = vmatpush.msra.mxu0 0.0
        %938 = vmatpush.msra.mxu0 0.0
        %939 = vmatpush.msra.mxu0 0.0
        %940 = vmatpush.msra.mxu0 0.0
        %941 = vmatpush.msra.mxu0 0.0
        %942 = vmatpush.msra.mxu0 0.0
        %943 = vmatpush.msra.mxu0 0.0
        %944 = vmatpush.msra.mxu0 0.0
        %945 = vmatpush.msra.mxu0 0.0
        %946 = vmatpush.msra.mxu0 0.0
        %947 = vmatpush.msra.mxu0 %v930
        %948 = vmatmul.f32.gmra.mxu0 %v926
        %v949 = vpop.f32.mrf.mxu0
        %v950 = vadd.f32 0.0, %v949
        %951 = vdwg.mxu0
        %v952 = vld [vmem:[%s3] sm:$0xff]
        %v953 = vld [vmem:[%s3 + $0x8] sm:$0xff]
        %v954 = vld [vmem:[%s3 + $0x10] sm:$0xff]
        %v955 = vld [vmem:[%s3 + $0x18] sm:$0xff]
        %v957 = vsel %vm899, %v865, 0
        %v960 = vsel %vm899, %v866, 0
        %962 = vmatpush.msra.mxu0 0.0
        %963 = vmatpush.msra.mxu0 0.0
        %964 = vmatpush.msra.mxu0 0.0
        %965 = vmatpush.msra.mxu0 0.0
        %966 = vmatpush.msra.mxu0 0.0
        %967 = vmatpush.msra.mxu0 0.0
        %968 = vmatpush.msra.mxu0 0.0
        %969 = vmatpush.msra.mxu0 0.0
        %970 = vmatpush.msra.mxu0 0.0
        %971 = vmatpush.msra.mxu0 0.0
        %972 = vmatpush.msra.mxu0 0.0
        %973 = vmatpush.msra.mxu0 0.0
        %974 = vmatpush.msra.mxu0 %v955
        %975 = vmatpush.msra.mxu0 %v954
        %976 = vmatpush.msra.mxu0 %v953
        %977 = vmatpush.msra.mxu0 %v952
        %978 = vmatmul.f32.gmra.mxu0 %v957
        %v979 = vpop.f32.mrf.mxu0
        %v980 = vadd.f32 0.0, %v979
        %981 = vmatmul.f32.gmra.mxu0 %v960
        %v982 = vpop.f32.mrf.mxu0
        %v983 = vadd.f32 0.0, %v982
        %984 = vdwg.mxu0
        %v985 = vld [vmem:[%s4] sm:$0xff]
        %v987 = vsel %vm868, %v950, 0
        %989 = vmatpush.msra.mxu0 0.0
        %990 = vmatpush.msra.mxu0 0.0
        %991 = vmatpush.msra.mxu0 0.0
        %992 = vmatpush.msra.mxu0 0.0
        %993 = vmatpush.msra.mxu0 0.0
        %994 = vmatpush.msra.mxu0 0.0
        %995 = vmatpush.msra.mxu0 0.0
        %996 = vmatpush.msra.mxu0 0.0
        %997 = vmatpush.msra.mxu0 0.0
        %998 = vmatpush.msra.mxu0 0.0
        %999 = vmatpush.msra.mxu0 0.0
        %1000 = vmatpush.msra.mxu0 0.0
        %1001 = vmatpush.msra.mxu0 0.0
        %1002 = vmatpush.msra.mxu0 0.0
        %1003 = vmatpush.msra.mxu0 %v983
        %1004 = vmatpush.msra.mxu0 %v980
        %1005 = vmatmul.f32.gmra.mxu0 %v987
        %v1006 = vpop.f32.mrf.mxu0
        %v1007 = vadd.f32 %v985, %v1006
        %1008 = vdwg.mxu0
        %v1009 = vxor.u32 %v1007, 2147483648
        %v1010 = vmul.f32 %v1009, 1.442695
        %v1011 = vpow.pop %v1010
        %v1012 = vadd.f32 %v1011, 1.0
        %v1013 = vrcp.pop %v1012
        %v1014 = vmul.f32 %v1012, %v1013
        %v1015 = vsub.f32 1.0, %v1014
        %v1016 = vmul.f32 %v1013, %v1015
        %v1017 = vadd.f32 %v1013, %v1016
        %vm1018 = vweird.f32 %v1012
        %vm1019 = vweird.f32 %v1013
        %vm1020 = vmor %vm1018, %vm1019
        %v1021 = vsel %vm1020, %v1013, %v1017
        %v1022 = vand.u32 2147483647, %v1012
        %vm1023 = vcmp.eq.f32.partialorder %v1022, 8.507059e+37
        %v1024 = vand.u32 %v1012, 2147483648
        %v1025 = vor.u32 1.1754944e-38, %v1024
        %v1026 = vsel %vm1023, %v1025, %v1021
        %v1027 = vmul.f32 1.0, %v1026
        %v1028 = vld [vmem:[#allocation5] sm:$0xff]
        %vm1029 = vcmask 64512
        %v1031 = vsel %vm1029, %v1028, 0
        %1033 = vmatpush.msra.mxu0 0.0
        %1034 = vmatpush.msra.mxu0 0.0
        %1035 = vmatpush.msra.mxu0 0.0
        %1036 = vmatpush.msra.mxu0 0.0
        %1037 = vmatpush.msra.mxu0 0.0
        %1038 = vmatpush.msra.mxu0 0.0
        %1039 = vmatpush.msra.mxu0 0.0
        %1040 = vmatpush.msra.mxu0 0.0
        %1041 = vmatpush.msra.mxu0 0.0
        %1042 = vmatpush.msra.mxu0 0.0
        %1043 = vmatpush.msra.mxu0 0.0
        %1044 = vmatpush.msra.mxu0 0.0
        %1045 = vmatpush.msra.mxu0 0.0
        %1046 = vmatpush.msra.mxu0 0.0
        %1047 = vmatpush.msra.mxu0 0.0
        %1048 = vmatpush.msra.mxu0 %v1027
        %1049 = vmatmul.f32.gmra.mxu0 %v1031
        %v1050 = vpop.f32.mrf.mxu0
        %v1051 = vadd.f32 0.0, %v1050
        %1052 = vdwg.mxu0
        %v1053 = vsel %vm1029, %v1051, -inf
        %v1054 = vrot.slane %v1053, 4
        %v1055 = vmax.f32 %v1053, %v1054
        %v1056 = vrot.slane %v1055, 2
        %v1057 = vmax.f32 %v1055, %v1056
        %v1058 = vrot.slane %v1057, 1
        %v1059 = vmax.f32 %v1057, %v1058
        %v1060 = vsub.f32 %v1051, %v1059
        %v1061 = vmul.f32 %v1060, 1.442695
        %v1062 = vpow.pop %v1061
        %v1063 = vsel %vm1029, %v1062, 0.0
        %v1064 = vrot.slane %v1063, 4
        %v1065 = vadd.f32 %v1063, %v1064
        %v1066 = vrot.slane %v1065, 2
        %v1067 = vadd.f32 %v1065, %v1066
        %v1068 = vrot.slane %v1067, 1
        %v1069 = vadd.f32 %v1067, %v1068
        %v1070 = vrcp.pop %v1069
        %v1071 = vmul.f32 %v1069, %v1070
        %v1072 = vsub.f32 1.0, %v1071
        %v1073 = vmul.f32 %v1070, %v1072
        %v1074 = vadd.f32 %v1070, %v1073
        %vm1075 = vweird.f32 %v1069
        %vm1076 = vweird.f32 %v1070
        %vm1077 = vmor %vm1075, %vm1076
        %v1078 = vsel %vm1077, %v1070, %v1074
        %v1079 = vand.u32 2147483647, %v1069
        %vm1080 = vcmp.eq.f32.partialorder %v1079, 8.507059e+37
        %v1081 = vand.u32 %v1069, 2147483648
        %v1082 = vor.u32 1.1754944e-38, %v1081
        %v1083 = vsel %vm1080, %v1082, %v1078
        %v1084 = vmul.f32 %v1062, %v1083
        %v1085 = vld [vmem:[%s7] sm:$0xff]
        %v1086 = vld [vmem:[%s7 + $0x8] sm:$0xff]
        %v1087 = vld [vmem:[%s7 + $0x10] sm:$0xff]
        %v1088 = vld [vmem:[%s7 + $0x18] sm:$0xff]
        %v1089 = vld [vmem:[%s9] sm:$0xff]
        %v1091 = vsel %vm1029, %v1084, 0
        %1093 = vmatpush.msra.mxu0 0.0
        %1094 = vmatpush.msra.mxu0 0.0
        %1095 = vmatpush.msra.mxu0 0.0
        %1096 = vmatpush.msra.mxu0 0.0
        %1097 = vmatpush.msra.mxu0 0.0
        %1098 = vmatpush.msra.mxu0 0.0
        %1099 = vmatpush.msra.mxu0 0.0
        %1100 = vmatpush.msra.mxu0 0.0
        %1101 = vmatpush.msra.mxu0 0.0
        %1102 = vmatpush.msra.mxu0 0.0
        %1103 = vmatpush.msra.mxu0 0.0
        %1104 = vmatpush.msra.mxu0 0.0
        %1105 = vmatpush.msra.mxu0 0.0
        %1106 = vmatpush.msra.mxu0 0.0
        %1107 = vmatpush.msra.mxu0 0.0
        %1108 = vmatpush.msra.mxu0 %v1089
        %1109 = vmatmul.f32.gmra.mxu0 %v1091
        %v1110 = vpop.f32.mrf.mxu0
        %v1111 = vadd.f32 0.0, %v1110
        %1112 = vdwg.mxu0
        %v1114 = vsel %vm1029, %v1085, 0
        %v1117 = vsel %vm1029, %v1086, 0
        %v1120 = vsel %vm1029, %v1087, 0
        %v1123 = vsel %vm1029, %v1088, 0
        %1125 = vmatpush.msra.mxu0 0.0
        %1126 = vmatpush.msra.mxu0 0.0
        %1127 = vmatpush.msra.mxu0 0.0
        %1128 = vmatpush.msra.mxu0 0.0
        %1129 = vmatpush.msra.mxu0 0.0
        %1130 = vmatpush.msra.mxu0 0.0
        %1131 = vmatpush.msra.mxu0 0.0
        %1132 = vmatpush.msra.mxu0 0.0
        %1133 = vmatpush.msra.mxu0 0.0
        %1134 = vmatpush.msra.mxu0 0.0
        %1135 = vmatpush.msra.mxu0 0.0
        %1136 = vmatpush.msra.mxu0 0.0
        %1137 = vmatpush.msra.mxu0 0.0
        %1138 = vmatpush.msra.mxu0 0.0
        %1139 = vmatpush.msra.mxu0 0.0
        %1140 = vmatpush.msra.mxu0 %v1111
        %1141 = vmatmul.f32.gmra.mxu0 %v1114
        %v1142 = vpop.f32.mrf.mxu0
        %v1143 = vadd.f32 0.0, %v1142
        %1144 = vmatmul.f32.gmra.mxu0 %v1117
        %v1145 = vpop.f32.mrf.mxu0
        %v1146 = vadd.f32 0.0, %v1145
        %1147 = vmatmul.f32.gmra.mxu0 %v1120
        %v1148 = vpop.f32.mrf.mxu0
        %v1149 = vadd.f32 0.0, %v1148
        %1150 = vmatmul.f32.gmra.mxu0 %v1123
        %v1151 = vpop.f32.mrf.mxu0
        %v1152 = vadd.f32 0.0, %v1151
        %1153 = vdwg.mxu0
        %1155 = vset.pattern.permute.xlu0 0
        %1156 = vperm.xlu0 %1155, %v1143
        %v1157 = vpop.permute.xlu0 %1156
        %1160 = vset.pattern.permute.xlu0 0
        %1161 = vperm.xlu0 %1160, %v1146
        %v1162 = vpop.permute.xlu0 %1161
        %1165 = vset.pattern.permute.xlu0 0
        %1166 = vperm.xlu0 %1165, %v1149
        %v1167 = vpop.permute.xlu0 %1166
        %1170 = vset.pattern.permute.xlu0 0
        %1171 = vperm.xlu0 %1170, %v1152
        %v1172 = vpop.permute.xlu0 %1171
        %v1174 = vmul.f32 %v895, %v1157
        %v1175 = vmul.f32 %v896, %v1162
        %v1176 = vmul.f32 %v897, %v1167
        %v1177 = vmul.f32 %v898, %v1172
        %1178 = vmatpush.msra.mxu0 0.0
        %1179 = vmatpush.msra.mxu0 0.0
        %1180 = vmatpush.msra.mxu0 0.0
        %1181 = vmatpush.msra.mxu0 0.0
        %1182 = vmatpush.msra.mxu0 0.0
        %1183 = vmatpush.msra.mxu0 0.0
        %1184 = vmatpush.msra.mxu0 0.0
        %1185 = vmatpush.msra.mxu0 0.0
        %1186 = vmatpush.msra.mxu0 0.0
        %1187 = vmatpush.msra.mxu0 0.0
        %1188 = vmatpush.msra.mxu0 0.0
        %1189 = vmatpush.msra.mxu0 0.0
        %1190 = vmatpush.msra.mxu0 %v1177
        %1191 = vmatpush.msra.mxu0 %v1176
        %1192 = vmatpush.msra.mxu0 %v1175
        %1193 = vmatpush.msra.mxu0 %v1174
        %1194 = vmatmul.f32.gmra.mxu0 %v957
        %v1195 = vpop.f32.mrf.mxu0
        %v1196 = vadd.f32 0.0, %v1195
        %1197 = vmatmul.f32.gmra.mxu0 %v960
        %v1198 = vpop.f32.mrf.mxu0
        %v1199 = vadd.f32 0.0, %v1198
        %1200 = vdwg.mxu0
        %v1201 = vld [vmem:[#allocation8] sm:$0xf]
        %v1203 = vsel %vm924, %v1196, 0
        %v1206 = vsel %vm924, %v1199, 0
        %v1209 = vsel %vm928, %v1201, 0
        %1211 = vmatpush.msra.mxu0 0.0
        %1212 = vmatpush.msra.mxu0 0.0
        %1213 = vmatpush.msra.mxu0 0.0
        %1214 = vmatpush.msra.mxu0 0.0
        %1215 = vmatpush.msra.mxu0 0.0
        %1216 = vmatpush.msra.mxu0 0.0
        %1217 = vmatpush.msra.mxu0 0.0
        %1218 = vmatpush.msra.mxu0 0.0
        %1219 = vmatpush.msra.mxu0 0.0
        %1220 = vmatpush.msra.mxu0 0.0
        %1221 = vmatpush.msra.mxu0 0.0
        %1222 = vmatpush.msra.mxu0 0.0
        %1223 = vmatpush.msra.mxu0 0.0
        %1224 = vmatpush.msra.mxu0 0.0
        %1225 = vmatpush.msra.mxu0 0.0
        %1226 = vmatpush.msra.mxu0 %v1209
        %1227 = vmatmul.f32.gmra.mxu0 %v1203
        %v1228 = vpop.f32.mrf.mxu0
        %v1229 = vadd.f32 0.0, %v1228
        %1230 = vmatmul.f32.gmra.mxu0 %v1206
        %v1231 = vpop.f32.mrf.mxu0
        %v1232 = vadd.f32 0.0, %v1231
        %1233 = vdwg.mxu0
        %v1234 = vld [vmem:[%s11] sm:$0xff]
        %v1235 = vld [vmem:[%s11 + $0x8] sm:$0xff]
        %v1236 = vld [vmem:[%s11 + $0x10] sm:$0xff]
        %v1237 = vld [vmem:[%s11 + $0x18] sm:$0xff]
        %1238 = vmatpush.msra.mxu0 0.0
        %1239 = vmatpush.msra.mxu0 0.0
        %1240 = vmatpush.msra.mxu0 0.0
        %1241 = vmatpush.msra.mxu0 0.0
        %1242 = vmatpush.msra.mxu0 0.0
        %1243 = vmatpush.msra.mxu0 0.0
        %1244 = vmatpush.msra.mxu0 0.0
        %1245 = vmatpush.msra.mxu0 0.0
        %1246 = vmatpush.msra.mxu0 0.0
        %1247 = vmatpush.msra.mxu0 0.0
        %1248 = vmatpush.msra.mxu0 0.0
        %1249 = vmatpush.msra.mxu0 0.0
        %1250 = vmatpush.msra.mxu0 %v1237
        %1251 = vmatpush.msra.mxu0 %v1236
        %1252 = vmatpush.msra.mxu0 %v1235
        %1253 = vmatpush.msra.mxu0 %v1234
        %1254 = vmatmul.f32.gmra.mxu0 %v957
        %v1255 = vpop.f32.mrf.mxu0
        %v1256 = vadd.f32 0.0, %v1255
        %1257 = vmatmul.f32.gmra.mxu0 %v960
        %v1258 = vpop.f32.mrf.mxu0
        %v1259 = vadd.f32 0.0, %v1258
        %1260 = vdwg.mxu0
        %v1262 = vsel %vm1029, %v1256, 0
        %v1265 = vsel %vm1029, %v1259, 0
        %1267 = vmatpush.msra.mxu0 0.0
        %1268 = vmatpush.msra.mxu0 0.0
        %1269 = vmatpush.msra.mxu0 0.0
        %1270 = vmatpush.msra.mxu0 0.0
        %1271 = vmatpush.msra.mxu0 0.0
        %1272 = vmatpush.msra.mxu0 0.0
        %1273 = vmatpush.msra.mxu0 0.0
        %1274 = vmatpush.msra.mxu0 0.0
        %1275 = vmatpush.msra.mxu0 0.0
        %1276 = vmatpush.msra.mxu0 0.0
        %1277 = vmatpush.msra.mxu0 0.0
        %1278 = vmatpush.msra.mxu0 0.0
        %1279 = vmatpush.msra.mxu0 0.0
        %1280 = vmatpush.msra.mxu0 0.0
        %1281 = vmatpush.msra.mxu0 0.0
        %1282 = vmatpush.msra.mxu0 %v1084
        %1283 = vmatmul.f32.gmra.mxu0 %v1262
        %v1284 = vpop.f32.mrf.mxu0
        %v1285 = vadd.f32 0.0, %v1284
        %1286 = vmatmul.f32.gmra.mxu0 %v1265
        %v1287 = vpop.f32.mrf.mxu0
        %v1288 = vadd.f32 0.0, %v1287
        %1289 = vdwg.mxu0
        %v1290 = vld [vmem:[%s12] sm:$0xff]
        %v1291 = vld [vmem:[%s12 + $0x8] sm:$0xff]
        %v1293 = vsel %vm1029, %v1229, 0
        %v1296 = vsel %vm1029, %v1232, 0
        %v1299 = vsel %vm1029, %v1285, 0
        %v1302 = vsel %vm1029, %v1288, 0
        %1304 = vmatpush.xpose.msra.mxu0 0.0
        %1305 = vmatpush.xpose.msra.mxu0 0.0
        %1306 = vmatpush.xpose.msra.mxu0 0.0
        %1307 = vmatpush.xpose.msra.mxu0 0.0
        %1308 = vmatpush.xpose.msra.mxu0 0.0
        %1309 = vmatpush.xpose.msra.mxu0 0.0
        %1310 = vmatpush.xpose.msra.mxu0 0.0
        %1311 = vmatpush.xpose.msra.mxu0 0.0
        %1312 = vmatpush.xpose.msra.mxu0 0.0
        %1313 = vmatpush.xpose.msra.mxu0 0.0
        %1314 = vmatpush.xpose.msra.mxu0 0.0
        %1315 = vmatpush.xpose.msra.mxu0 0.0
        %1316 = vmatpush.xpose.msra.mxu0 0.0
        %1317 = vmatpush.xpose.msra.mxu0 0.0
        %1318 = vmatpush.xpose.msra.mxu0 %v1302
        %1319 = vmatpush.xpose.msra.mxu0 %v1299
        %1320 = vmatmul.f32.gmra.mxu0 %v1293
        %v1321 = vpop.f32.mrf.mxu0
        %v1322 = vadd.f32 %v1290, %v1321
        %1323 = vmatmul.f32.gmra.mxu0 %v1296
        %v1324 = vpop.f32.mrf.mxu0
        %v1325 = vadd.f32 %v1291, %v1324
        %1326 = vdwg.mxu0
        %v1327 = vxor.u32 %v1322, 2147483648
        %v1328 = vxor.u32 %v1325, 2147483648
        %v1329 = vmul.f32 %v1327, 1.442695
        %v1330 = vpow.pop %v1329
        %v1331 = vmul.f32 %v1328, 1.442695
        %v1332 = vpow.pop %v1331
        %v1333 = vadd.f32 %v1330, 1.0
        %v1334 = vadd.f32 %v1332, 1.0
        %v1335 = vrcp.pop %v1333
        %v1336 = vmul.f32 %v1333, %v1335
        %v1337 = vsub.f32 1.0, %v1336
        %v1338 = vmul.f32 %v1335, %v1337
        %v1339 = vadd.f32 %v1335, %v1338
        %vm1340 = vweird.f32 %v1333
        %vm1341 = vweird.f32 %v1335
        %vm1342 = vmor %vm1340, %vm1341
        %v1343 = vsel %vm1342, %v1335, %v1339
        %v1344 = vand.u32 2147483647, %v1333
        %vm1345 = vcmp.eq.f32.partialorder %v1344, 8.507059e+37
        %v1346 = vand.u32 %v1333, 2147483648
        %v1347 = vor.u32 1.1754944e-38, %v1346
        %v1348 = vsel %vm1345, %v1347, %v1343
        %v1349 = vmul.f32 1.0, %v1348
        %v1350 = vrcp.pop %v1334
        %v1351 = vmul.f32 %v1334, %v1350
        %v1352 = vsub.f32 1.0, %v1351
        %v1353 = vmul.f32 %v1350, %v1352
        %v1354 = vadd.f32 %v1350, %v1353
        %vm1355 = vweird.f32 %v1334
        %vm1356 = vweird.f32 %v1350
        %vm1357 = vmor %vm1355, %vm1356
        %v1358 = vsel %vm1357, %v1350, %v1354
        %v1359 = vand.u32 2147483647, %v1334
        %vm1360 = vcmp.eq.f32.partialorder %v1359, 8.507059e+37
        %v1361 = vand.u32 %v1334, 2147483648
        %v1362 = vor.u32 1.1754944e-38, %v1361
        %v1363 = vsel %vm1360, %v1362, %v1358
        %v1364 = vmul.f32 1.0, %v1363
        %v1365 = vld [vmem:[%s13] sm:$0xff]
        %v1366 = vld [vmem:[%s13 + $0x8] sm:$0xff]
        %v1368 = vsel %vm868, %v1365, 0
        %v1371 = vsel %vm868, %v1366, 0
        %1373 = vmatpush.msra.mxu0 0.0
        %1374 = vmatpush.msra.mxu0 0.0
        %1375 = vmatpush.msra.mxu0 0.0
        %1376 = vmatpush.msra.mxu0 0.0
        %1377 = vmatpush.msra.mxu0 0.0
        %1378 = vmatpush.msra.mxu0 0.0
        %1379 = vmatpush.msra.mxu0 0.0
        %1380 = vmatpush.msra.mxu0 0.0
        %1381 = vmatpush.msra.mxu0 0.0
        %1382 = vmatpush.msra.mxu0 0.0
        %1383 = vmatpush.msra.mxu0 0.0
        %1384 = vmatpush.msra.mxu0 0.0
        %1385 = vmatpush.msra.mxu0 0.0
        %1386 = vmatpush.msra.mxu0 0.0
        %1387 = vmatpush.msra.mxu0 %v1364
        %1388 = vmatpush.msra.mxu0 %v1349
        %1389 = vmatmul.f32.gmra.mxu0 %v1368
        %v1390 = vpop.f32.mrf.mxu0
        %v1391 = vadd.f32 0.0, %v1390
        %1392 = vmatmul.f32.gmra.mxu0 %v1371
        %v1393 = vpop.f32.mrf.mxu0
        %v1394 = vadd.f32 0.0, %v1393
        %1395 = vdwg.mxu0
        %v1396 = vsel %vm868, %v1391, -inf
        %v1397 = vsel %vm868, %v1394, -inf
        %v1398 = vmax.f32 %v1396, %v1397
        %v1399 = vrot.slane %v1398, 4
        %v1400 = vmax.f32 %v1398, %v1399
        %v1401 = vrot.slane %v1400, 2
        %v1402 = vmax.f32 %v1400, %v1401
        %v1403 = vrot.slane %v1402, 1
        %v1404 = vmax.f32 %v1402, %v1403
        %v1405 = vsub.f32 %v1391, %v1404
        %v1406 = vsub.f32 %v1394, %v1404
        %v1407 = vmul.f32 %v1405, 1.442695
        %v1408 = vpow.pop %v1407
        %v1409 = vmul.f32 %v1406, 1.442695
        %v1410 = vpow.pop %v1409
        %v1411 = vsel %vm868, %v1408, 0.0
        %v1412 = vsel %vm868, %v1410, 0.0
        %v1413 = vadd.f32 %v1411, %v1412
        %v1414 = vrot.slane %v1413, 4
        %v1415 = vadd.f32 %v1413, %v1414
        %v1416 = vrot.slane %v1415, 2
        %v1417 = vadd.f32 %v1415, %v1416
        %v1418 = vrot.slane %v1417, 1
        %v1419 = vadd.f32 %v1417, %v1418
        %v1420 = vrcp.pop %v1419
        %v1421 = vmul.f32 %v1419, %v1420
        %v1422 = vsub.f32 1.0, %v1421
        %v1423 = vmul.f32 %v1420, %v1422
        %v1424 = vadd.f32 %v1420, %v1423
        %vm1425 = vweird.f32 %v1419
        %vm1426 = vweird.f32 %v1420
        %vm1427 = vmor %vm1425, %vm1426
        %v1428 = vsel %vm1427, %v1420, %v1424
        %v1429 = vand.u32 2147483647, %v1419
        %vm1430 = vcmp.eq.f32.partialorder %v1429, 8.507059e+37
        %v1431 = vand.u32 %v1419, 2147483648
        %v1432 = vor.u32 1.1754944e-38, %v1431
        %v1433 = vsel %vm1430, %v1432, %v1428
        %v1434 = vmul.f32 %v1408, %v1433
        %v1435 = vmul.f32 %v1410, %v1433
        %v1436 = vld [vmem:[%s15] sm:$0xff]
        %v1437 = vld [vmem:[%s15 + $0x8] sm:$0xff]
        %v1438 = vld [vmem:[%s14] sm:$0xff]
        %v1439 = vld [vmem:[%s14 + $0x8] sm:$0xff]
        %v1440 = vmul.f32 %v1434, %v1438
        %v1441 = vmul.f32 %v1435, %v1439
        %v1442 = vsel %vm868, %v1440, 0.0
        %1443 = vadd.xlane.f32.xlu0 %v1442
        %v1444 = vpop.xlane.xlu0 %1443
        %v1445 = vsel %vm868, %v1441, 0.0
        %1446 = vadd.xlane.f32.xlu0 %v1445
        %v1447 = vpop.xlane.xlu0 %1446
        %v1448 = vmul.f32 %v1436, %v1434
        %v1449 = vmul.f32 %v1437, %v1435
        %v1450 = vmul.f32 %v1444, %v865
        %v1451 = vmul.f32 %v1447, %v866
        %v1453 = vsel %vm868, %v1448, 0
        %v1456 = vsel %vm868, %v1449, 0
        %1458 = vmatpush.msra.mxu0 0.0
        %1459 = vmatpush.msra.mxu0 0.0
        %1460 = vmatpush.msra.mxu0 0.0
        %1461 = vmatpush.msra.mxu0 0.0
        %1462 = vmatpush.msra.mxu0 0.0
        %1463 = vmatpush.msra.mxu0 0.0
        %1464 = vmatpush.msra.mxu0 0.0
        %1465 = vmatpush.msra.mxu0 0.0
        %1466 = vmatpush.msra.mxu0 0.0
        %1467 = vmatpush.msra.mxu0 0.0
        %1468 = vmatpush.msra.mxu0 0.0
        %1469 = vmatpush.msra.mxu0 0.0
        %1470 = vmatpush.msra.mxu0 0.0
        %1471 = vmatpush.msra.mxu0 0.0
        %1472 = vmatpush.msra.mxu0 %v1451
        %1473 = vmatpush.msra.mxu0 %v1450
        %1474 = vmatmul.f32.gmra.mxu0 %v1453
        %v1475 = vpop.f32.mrf.mxu0
        %v1476 = vadd.f32 0.0, %v1475
        %1477 = vmatmul.f32.gmra.mxu0 %v1456
        %v1478 = vpop.f32.mrf.mxu0
        %v1479 = vadd.f32 0.0, %v1478
        %1480 = vdwg.mxu0
        %v1482 = vsel %vm868, %v1436, 0
        %v1485 = vsel %vm868, %v1437, 0
        %1487 = vmatpush.msra.mxu0 0.0
        %1488 = vmatpush.msra.mxu0 0.0
        %1489 = vmatpush.msra.mxu0 0.0
        %1490 = vmatpush.msra.mxu0 0.0
        %1491 = vmatpush.msra.mxu0 0.0
        %1492 = vmatpush.msra.mxu0 0.0
        %1493 = vmatpush.msra.mxu0 0.0
        %1494 = vmatpush.msra.mxu0 0.0
        %1495 = vmatpush.msra.mxu0 0.0
        %1496 = vmatpush.msra.mxu0 0.0
        %1497 = vmatpush.msra.mxu0 0.0
        %1498 = vmatpush.msra.mxu0 0.0
        %1499 = vmatpush.msra.mxu0 0.0
        %1500 = vmatpush.msra.mxu0 0.0
        %1501 = vmatpush.msra.mxu0 %v1479
        %1502 = vmatpush.msra.mxu0 %v1476
        %1503 = vmatmul.f32.gmra.mxu0 %v1482
        %v1504 = vpop.f32.mrf.mxu0
        %v1505 = vadd.f32 0.0, %v1504
        %1506 = vmatmul.f32.gmra.mxu0 %v1485
        %v1507 = vpop.f32.mrf.mxu0
        %v1508 = vadd.f32 0.0, %v1507
        %1509 = vdwg.mxu0
        %v1510 = vmul.f32 %v1505, 2.0
        %v1511 = vmul.f32 %v1508, 2.0
        %v1512 = vsub.f32 %v1510, %v1450
        %v1513 = vsub.f32 %v1511, %v1451
        %1516 = vrot.lane.b32.xlu0 %v1476, 32
        %v1517 = vpop.permute.xlu0 %1516
        %1518 = vrot.lane.b32.xlu0 %v1479, 32
        %v1519 = vpop.permute.xlu0 %1518
        %1524 = vrot.lane.b32.xlu0 %v1512, 64
        %v1525 = vpop.permute.xlu0 %1524
        %1526 = vrot.lane.b32.xlu0 %v1513, 64
        %v1527 = vpop.permute.xlu0 %1526
        %v1530 = vsel %vm899, %v1450, %v1517
        %v1531 = vsel %vm899, %v1451, %v1519
        %vm1532 = vcmask 523264
        %v1533 = vsel %vm1532, %v1530, %v1525
        %v1534 = vsel %vm1532, %v1531, %v1527
        %v1535 = vld [vmem:[#allocation10] sm:$0xff]
        %v1536 = vld [vmem:[#allocation10 + $0x8] sm:$0xff]
        %v1537 = vld [vmem:[#allocation10 + $0x10] sm:$0xff]
        %v1538 = vld [vmem:[#allocation10 + $0x18] sm:$0xff]
        %v1539 = vld [vmem:[#allocation10 + $0x20] sm:$0xff]
        %v1540 = vld [vmem:[#allocation10 + $0x28] sm:$0xff]
        %v1541 = vld [vmem:[#allocation10 + $0x30] sm:$0xff]
        %v1542 = vld [vmem:[#allocation10 + $0x38] sm:$0xff]
        %v1543 = vld [vmem:[#allocation10 + $0x40] sm:$0xff]
        %v1544 = vld [vmem:[#allocation10 + $0x48] sm:$0xff]
        %v1545 = vld [vmem:[#allocation10 + $0x50] sm:$0xff]
        %v1546 = vld [vmem:[#allocation10 + $0x58] sm:$0xff]
        %v1547 = vld [vmem:[%s17] sm:$0x1]
        %v1549 = vperm.slane %v1547, 0
        %vm1551 = vcmask 785408
        %v1553 = vsel %vm1551, %v1533, 0
        %v1556 = vsel %vm1551, %v1534, 0
        %1558 = vmatpush.msra.mxu0 0.0
        %1559 = vmatpush.msra.mxu0 0.0
        %1560 = vmatpush.msra.mxu0 0.0
        %1561 = vmatpush.msra.mxu0 0.0
        %1562 = vmatpush.msra.mxu0 %v1546
        %1563 = vmatpush.msra.mxu0 %v1545
        %1564 = vmatpush.msra.mxu0 %v1544
        %1565 = vmatpush.msra.mxu0 %v1543
        %1566 = vmatpush.msra.mxu0 %v1542
        %1567 = vmatpush.msra.mxu0 %v1541
        %1568 = vmatpush.msra.mxu0 %v1540
        %1569 = vmatpush.msra.mxu0 %v1539
        %1570 = vmatpush.msra.mxu0 %v1538
        %1571 = vmatpush.msra.mxu0 %v1537
        %1572 = vmatpush.msra.mxu0 %v1536
        %1573 = vmatpush.msra.mxu0 %v1535
        %1574 = vmatmul.f32.gmra.mxu0 %v1553
        %v1575 = vpop.f32.mrf.mxu0
        %v1576 = vadd.f32 %v1549, %v1575
        %1577 = vmatmul.f32.gmra.mxu0 %v1556
        %v1578 = vpop.f32.mrf.mxu0
        %v1579 = vadd.f32 %v1549, %v1578
        %1580 = vdwg.mxu0
        %v1581 = vmax.f32 %v1576, 0.0
        %v1582 = vmax.f32 %v1579, 0.0
        %v1583 = vld [vmem:[%s18] sm:$0xff]
        %v1584 = vld [vmem:[%s18 + $0x8] sm:$0xff]
        %v1585 = vld [vmem:[%s18 + $0x10] sm:$0xff]
        %v1586 = vld [vmem:[%s18 + $0x18] sm:$0xff]
        %v1587 = vld [vmem:[%s18 + $0x20] sm:$0xff]
        %v1588 = vld [vmem:[%s18 + $0x28] sm:$0xff]
        %v1589 = vld [vmem:[%s18 + $0x30] sm:$0xff]
        %v1590 = vld [vmem:[%s18 + $0x38] sm:$0xff]
        %v1591 = vld [vmem:[%s18 + $0x40] sm:$0xff]
        %v1592 = vld [vmem:[%s18 + $0x48] sm:$0xff]
        %v1593 = vld [vmem:[%s18 + $0x50] sm:$0xff]
        %v1594 = vld [vmem:[%s18 + $0x58] sm:$0xff]
        %v1595 = vld [vmem:[%s18 + $0x60] sm:$0xff]
        %v1596 = vld [vmem:[%s18 + $0x68] sm:$0xff]
        %v1597 = vld [vmem:[%s18 + $0x70] sm:$0xff]
        %v1598 = vld [vmem:[%s18 + $0x78] sm:$0xff]
        %v1599 = vld [vmem:[%s19] sm:$0x1]
        %v1601 = vperm.slane %v1599, 0
        %1603 = vmatpush.msra.mxu0 %v1598
        %1604 = vmatpush.msra.mxu0 %v1597
        %1605 = vmatpush.msra.mxu0 %v1596
        %1606 = vmatpush.msra.mxu0 %v1595
        %1607 = vmatpush.msra.mxu0 %v1594
        %1608 = vmatpush.msra.mxu0 %v1593
        %1609 = vmatpush.msra.mxu0 %v1592
        %1610 = vmatpush.msra.mxu0 %v1591
        %1611 = vmatpush.msra.mxu0 %v1590
        %1612 = vmatpush.msra.mxu0 %v1589
        %1613 = vmatpush.msra.mxu0 %v1588
        %1614 = vmatpush.msra.mxu0 %v1587
        %1615 = vmatpush.msra.mxu0 %v1586
        %1616 = vmatpush.msra.mxu0 %v1585
        %1617 = vmatpush.msra.mxu0 %v1584
        %1618 = vmatpush.msra.mxu0 %v1583
        %1619 = vmatmul.f32.gmra.mxu0 %v1581
        %v1620 = vpop.f32.mrf.mxu0
        %v1621 = vadd.f32 %v1601, %v1620
        %1622 = vmatmul.f32.gmra.mxu0 %v1582
        %v1623 = vpop.f32.mrf.mxu0
        %v1624 = vadd.f32 %v1601, %v1623
        %1625 = vdwg.mxu0
        %v1626 = vld [vmem:[%s20] sm:$0xff]
        %v1627 = vld [vmem:[%s20 + $0x8] sm:$0xff]
        %v1628 = vld [vmem:[%s20 + $0x10] sm:$0xff]
        %v1629 = vld [vmem:[%s20 + $0x18] sm:$0xff]
        %v1630 = vld [vmem:[%s21] sm:$0x1]
        %v1632 = vperm.slane %v1630, 0
        %1634 = vmatpush.msra.mxu0 0.0
        %1635 = vmatpush.msra.mxu0 0.0
        %1636 = vmatpush.msra.mxu0 0.0
        %1637 = vmatpush.msra.mxu0 0.0
        %1638 = vmatpush.msra.mxu0 0.0
        %1639 = vmatpush.msra.mxu0 0.0
        %1640 = vmatpush.msra.mxu0 0.0
        %1641 = vmatpush.msra.mxu0 0.0
        %1642 = vmatpush.msra.mxu0 0.0
        %1643 = vmatpush.msra.mxu0 0.0
        %1644 = vmatpush.msra.mxu0 0.0
        %1645 = vmatpush.msra.mxu0 0.0
        %1646 = vmatpush.msra.mxu0 %v1629
        %1647 = vmatpush.msra.mxu0 %v1628
        %1648 = vmatpush.msra.mxu0 %v1627
        %1649 = vmatpush.msra.mxu0 %v1626
        %1650 = vmatmul.f32.gmra.mxu0 %v957
        %v1651 = vpop.f32.mrf.mxu0
        %v1652 = vadd.f32 %v1632, %v1651
        %1653 = vmatmul.f32.gmra.mxu0 %v960
        %v1654 = vpop.f32.mrf.mxu0
        %v1655 = vadd.f32 %v1632, %v1654
        %1656 = vdwg.mxu0
        %v1657 = vadd.f32 %v1652, %v1621
        %v1658 = vadd.f32 %v1655, %v1624
        %v1659 = vmax.f32 %v1657, 0.0
        %v1660 = vmax.f32 %v1658, 0.0
        %v1661 = vld [vmem:[%s22] sm:$0xff]
        %v1662 = vld [vmem:[%s22 + $0x8] sm:$0xff]
        %v1663 = vld [vmem:[%s22 + $0x10] sm:$0xff]
        %v1664 = vld [vmem:[%s22 + $0x18] sm:$0xff]
        %v1665 = vld [vmem:[%s22 + $0x20] sm:$0xff]
        %v1666 = vld [vmem:[%s22 + $0x28] sm:$0xff]
        %v1667 = vld [vmem:[%s22 + $0x30] sm:$0xff]
        %v1668 = vld [vmem:[%s22 + $0x38] sm:$0xff]
        %v1669 = vld [vmem:[%s22 + $0x40] sm:$0xff]
        %v1670 = vld [vmem:[%s22 + $0x48] sm:$0xff]
        %v1671 = vld [vmem:[%s22 + $0x50] sm:$0xff]
        %v1672 = vld [vmem:[%s22 + $0x58] sm:$0xff]
        %v1673 = vld [vmem:[%s22 + $0x60] sm:$0xff]
        %v1674 = vld [vmem:[%s22 + $0x68] sm:$0xff]
        %v1675 = vld [vmem:[%s22 + $0x70] sm:$0xff]
        %v1676 = vld [vmem:[%s22 + $0x78] sm:$0xff]
        %v1677 = vld [vmem:[%s23] sm:$0xff]
        %1678 = vmatpush.msra.mxu0 %v1676
        %1679 = vmatpush.msra.mxu0 %v1675
        %1680 = vmatpush.msra.mxu0 %v1674
        %1681 = vmatpush.msra.mxu0 %v1673
        %1682 = vmatpush.msra.mxu0 %v1672
        %1683 = vmatpush.msra.mxu0 %v1671
        %1684 = vmatpush.msra.mxu0 %v1670
        %1685 = vmatpush.msra.mxu0 %v1669
        %1686 = vmatpush.msra.mxu0 %v1668
        %1687 = vmatpush.msra.mxu0 %v1667
        %1688 = vmatpush.msra.mxu0 %v1666
        %1689 = vmatpush.msra.mxu0 %v1665
        %1690 = vmatpush.msra.mxu0 %v1664
        %1691 = vmatpush.msra.mxu0 %v1663
        %1692 = vmatpush.msra.mxu0 %v1662
        %1693 = vmatpush.msra.mxu0 %v1661
        %1694 = vmatmul.f32.gmra.mxu0 %v1659
        %v1695 = vpop.f32.mrf.mxu0
        %v1696 = vadd.f32 0.0, %v1695
        %1697 = vmatmul.f32.gmra.mxu0 %v1660
        %v1698 = vpop.f32.mrf.mxu0
        %v1699 = vadd.f32 0.0, %v1698
        %1700 = vdwg.mxu0
        %v1701 = vmul.f32 %v1696, 0.0625
        %v1702 = vmul.f32 %v1699, 0.0625
        %v1704 = vsel %vm1029, %v1701, 0
        %v1707 = vsel %vm1029, %v1702, 0
        %1709 = vmatpush.msra.mxu0 0.0
        %1710 = vmatpush.msra.mxu0 0.0
        %1711 = vmatpush.msra.mxu0 0.0
        %1712 = vmatpush.msra.mxu0 0.0
        %1713 = vmatpush.msra.mxu0 0.0
        %1714 = vmatpush.msra.mxu0 0.0
        %1715 = vmatpush.msra.mxu0 0.0
        %1716 = vmatpush.msra.mxu0 0.0
        %1717 = vmatpush.msra.mxu0 0.0
        %1718 = vmatpush.msra.mxu0 0.0
        %1719 = vmatpush.msra.mxu0 0.0
        %1720 = vmatpush.msra.mxu0 0.0
        %1721 = vmatpush.msra.mxu0 0.0
        %1722 = vmatpush.msra.mxu0 0.0
        %1723 = vmatpush.msra.mxu0 0.0
        %1724 = vmatpush.msra.mxu0 %v1677
        %1725 = vmatmul.f32.gmra.mxu0 %v1704
        %v1726 = vpop.f32.mrf.mxu0
        %v1727 = vadd.f32 0.0, %v1726
        %1728 = vmatmul.f32.gmra.mxu0 %v1707
        %v1729 = vpop.f32.mrf.mxu0
        %v1730 = vadd.f32 0.0, %v1729
        %1731 = vdwg.mxu0
        %v1732 = vsub.f32 %v1659, %v1727
        %v1733 = vsub.f32 %v1660, %v1730
        %v1734 = vmul.f32 %v1732, %v1732
        %v1735 = vmul.f32 %v1733, %v1733
        %1736 = vmatpush.msra.mxu0 %v1676
        %1737 = vmatpush.msra.mxu0 %v1675
        %1738 = vmatpush.msra.mxu0 %v1674
        %1739 = vmatpush.msra.mxu0 %v1673
        %1740 = vmatpush.msra.mxu0 %v1672
        %1741 = vmatpush.msra.mxu0 %v1671
        %1742 = vmatpush.msra.mxu0 %v1670
        %1743 = vmatpush.msra.mxu0 %v1669
        %1744 = vmatpush.msra.mxu0 %v1668
        %1745 = vmatpush.msra.mxu0 %v1667
        %1746 = vmatpush.msra.mxu0 %v1666
        %1747 = vmatpush.msra.mxu0 %v1665
        %1748 = vmatpush.msra.mxu0 %v1664
        %1749 = vmatpush.msra.mxu0 %v1663
        %1750 = vmatpush.msra.mxu0 %v1662
        %1751 = vmatpush.msra.mxu0 %v1661
        %1752 = vmatmul.f32.gmra.mxu0 %v1734
        %v1753 = vpop.f32.mrf.mxu0
        %v1754 = vadd.f32 0.0, %v1753
        %1755 = vmatmul.f32.gmra.mxu0 %v1735
        %v1756 = vpop.f32.mrf.mxu0
        %v1757 = vadd.f32 0.0, %v1756
        %1758 = vdwg.mxu0
        %v1759 = vmul.f32 %v1754, 0.0625
        %v1760 = vmul.f32 %v1757, 0.0625
        %v1761 = vadd.f32 %v1759, 1e-05
        %v1762 = vadd.f32 %v1760, 1e-05
        %v1763 = vrsqrt.pop %v1761
        %v1764 = vmul.f32 %v1763, %v1761
        %v1765 = vmul.f32 %v1764, %v1763
        %v1766 = vmul.f32 0.5, %v1765
        %v1767 = vsub.f32 1.5, %v1766
        %v1768 = vmul.f32 %v1763, %v1767
        %vm1769 = vweird.f32 %v1761
        %vm1770 = vweird.f32 %v1763
        %vm1771 = vmor %vm1769, %vm1770
        %v1772 = vsel %vm1771, %v1763, %v1768
        %v1773 = vrsqrt.pop %v1762
        %v1774 = vmul.f32 %v1773, %v1762
        %v1775 = vmul.f32 %v1774, %v1773
        %v1776 = vmul.f32 0.5, %v1775
        %v1777 = vsub.f32 1.5, %v1776
        %v1778 = vmul.f32 %v1773, %v1777
        %vm1779 = vweird.f32 %v1762
        %vm1780 = vweird.f32 %v1773
        %vm1781 = vmor %vm1779, %vm1780
        %v1782 = vsel %vm1781, %v1773, %v1778
        %v1784 = vsel %vm1029, %v1772, 0
        %v1787 = vsel %vm1029, %v1782, 0
        %1789 = vmatpush.msra.mxu0 0.0
        %1790 = vmatpush.msra.mxu0 0.0
        %1791 = vmatpush.msra.mxu0 0.0
        %1792 = vmatpush.msra.mxu0 0.0
        %1793 = vmatpush.msra.mxu0 0.0
        %1794 = vmatpush.msra.mxu0 0.0
        %1795 = vmatpush.msra.mxu0 0.0
        %1796 = vmatpush.msra.mxu0 0.0
        %1797 = vmatpush.msra.mxu0 0.0
        %1798 = vmatpush.msra.mxu0 0.0
        %1799 = vmatpush.msra.mxu0 0.0
        %1800 = vmatpush.msra.mxu0 0.0
        %1801 = vmatpush.msra.mxu0 0.0
        %1802 = vmatpush.msra.mxu0 0.0
        %1803 = vmatpush.msra.mxu0 0.0
        %1804 = vmatpush.msra.mxu0 %v1677
        %1805 = vmatmul.f32.gmra.mxu0 %v1784
        %v1806 = vpop.f32.mrf.mxu0
        %v1807 = vadd.f32 0.0, %v1806
        %1808 = vmatmul.f32.gmra.mxu0 %v1787
        %v1809 = vpop.f32.mrf.mxu0
        %v1810 = vadd.f32 0.0, %v1809
        %1811 = vdwg.mxu0
        %v1812 = vmul.f32 %v1732, %v1807
        %v1813 = vmul.f32 %v1733, %v1810
        %v1814 = vld [vmem:[%s24] sm:$0x1]
        %v1816 = vperm.slane %v1814, 0
        %v1818 = vmul.f32 %v1812, %v1816
        %v1819 = vmul.f32 %v1813, %v1816
        %v1820 = vld [vmem:[%s25] sm:$0x1]
        %v1822 = vperm.slane %v1820, 0
        %v1824 = vadd.f32 %v1818, %v1822
        %v1825 = vadd.f32 %v1819, %v1822
        %1826 = vst [vmem:[%s859] sm:$0xff] %v1824
        %1827 = vst [vmem:[%s859 + $0x8] sm:$0xff] %v1825
        %s1828 = sand.u32 %s602, 1
        %s1829 = scalar_lea.sflag [#allocation4], %s1828
        %s1830 = sand.u32 %s602, 1
        %s1831 = smul.addr %s1830, 16
        %s1832 = scalar_lea.vmem [#allocation11], %s1831
        // Predicated region
        $region145: #{tpu_custom_call.1} parent=123 // pred_check
          %p1833 = pneg %p612
        $region146: #{tpu_custom_call.1} parent=123 // pred_check_branch
          %1835 = sbr.rel (%p1833) target = $region148
        $region147: #{tpu_custom_call.1} parent=123 // pred_region
          %1837 = vsyncadd %s1829, 0
          %s1838 = smul.addr %s43, 2
          %s1839 = smul.addr %s1838, 8
          %s1840 = scalar_lea.hbm %s26, %s1839
          %s1841 = sshll.u32 %s1832, 4
          %s1842 = int_to_ptr.vmem [resolvable:$true] %s1841
          %s1843 = sshll.u32 %s1840, 4
          %s1844 = int_to_ptr.hbm [resolvable:$true] %s1843
          %1849 = dma.vmem_to_hbm [thread:$0]  %s1842, 256, %s1844, %s1829, 128, 128, 8
        $region148: #{tpu_custom_call.1} parent=123 // pred_fallthru
          _
      $region124: #{tpu_custom_call.1} parent=5 // pred_fallthru
        _
      %p1850 = scmp.le.s32.totalorder 2, %s38
      // Predicated region
      $region149: #{tpu_custom_call.1} parent=5 // pred_check
        %p1851 = pneg %p1850
      $region150: #{tpu_custom_call.1} parent=5 // pred_check_branch
        %1853 = sbr.rel (%p1851) target = $region152
      $region151: #{tpu_custom_call.1} parent=5 // pred_region
        %s1854 = ssub.s32 %s38, 2
        // Predicated region
        $region153: #{tpu_custom_call.1} parent=151 // pred_check
          %p1855 = pneg %p618
        $region154: #{tpu_custom_call.1} parent=151 // pred_check_branch
          %1857 = sbr.rel (%p1855) target = $region156
        $region155: #{tpu_custom_call.1} parent=151 // pred_region
          %s1858 = sand.u32 %s603, 1
          %s1859 = scalar_lea.sflag [#allocation4], %s1858
          %s1860 = sand.u32 %s603, 1
          %s1861 = smul.addr %s1860, 16
          %s1862 = scalar_lea.vmem [#allocation11], %s1861
          %1864 = dma.done %s1859, 256
        $region156: #{tpu_custom_call.1} parent=151 // pred_fallthru
          _
      $region152: #{tpu_custom_call.1} parent=5 // pred_fallthru
        _
    $region6: #{tpu_custom_call.1} parent=1 // loop_footer
      %s42 = sadd.s32 1, %s38
    $region7: #{tpu_custom_call.1} parent=1 // loop_footer_branch
      %37 = sbr.rel target = $region3
    $region8: #{tpu_custom_call.1} parent=1 // loop_exit
      _
    %1865 = vsyncpa [#allocation3], 1
    %s1866 = scalar_lea.sflag [#allocation3], 1
    %1867 = vsyncpa %s1866, 1
    %1868 = vsyncpa [#allocation6], 1
    %1869 = vsyncpa [#allocation9], 1
    %1870 = vsyncpa [#allocation4], 1
    %s1871 = scalar_lea.sflag [#allocation4], 1
    %1872 = vsyncpa %s1871, 1

</llo_original>
